<compile_context>
chip_gen: v5e
topology: v5e:2x2
jax: 0.10.0
libtpu: 0.0.40
codegen_flags: <defaults>
</compile_context>

<pallas_src>
import functools

import numpy as np
import jax
import jax.numpy as jnp
from jax import lax
from jax.experimental import pallas as pl
from jax.experimental.pallas import tpu as pltpu


_PERIOD = 32   # stacked rows per image (28 input rows + 4 zero pad, tile aligned)

_WEIGHT_KEYS = ("m1", "b1", "m2", "b2", "sc1", "sc2",
                "w1", "c1", "w2", "c2", "w3", "c3")


# ----------------------------------------------------------------------------
# Pallas kernel: one whole batch block per grid step
# ----------------------------------------------------------------------------

def _lenet1_kernel(x_ref, m1_ref, b1_ref, m2_ref, b2_ref, sc1_ref, sc2_ref,
                   w1_ref, c1_ref, w2_ref, c2_ref, w3_ref, c3_ref,
                   out_ref, q2_ref):
    f32 = jnp.float32
    bb = out_ref.shape[0]                      # images in this block

    def band_matmul(lhs, rhs_ref, step):
        """sum_k lhs[k*step : k*step+L] @ rhs_ref[k]   (banded/Toeplitz conv)."""
        nk = rhs_ref.shape[0]
        L = lhs.shape[0] - (nk - 1) * step
        acc = jnp.dot(lhs[0:L, :], rhs_ref[0], preferred_element_type=f32)
        for k in range(1, nk):
            acc = acc + jnp.dot(lhs[k * step:k * step + L, :], rhs_ref[k],
                                preferred_element_type=f32)
        return acc

    def pool2x2(t, row_step, lane_step, sel):
        """2x2 max pool in f32: shifted row-max + shifted lane-max + exact 0/1
        lane-selection matmul (keeps the channel-grouped lane layout)."""
        L = t.shape[0] - row_step
        r = jnp.maximum(t[0:L, :], t[row_step:row_step + L, :])
        c = jnp.maximum(r[:, :-lane_step], r[:, lane_step:])
        return jnp.dot(c, sel, preferred_element_type=f32)

    # conv1 + sigmoid (folded -> tanh); rows 32i+r (r<24 valid), lanes j*6+oc
    t1 = jnp.tanh(band_matmul(x_ref[...], m1_ref, 1) + b1_ref[...])
    # pool1: valid rows 32i+2k (k<12), lanes j2*6+c
    h1 = pool2x2(t1, 1, 6, sc1_ref[...]).astype(jnp.bfloat16)
    # conv2 + tanh on the stretched rows (stride-2 band); valid rows 32i+2r2,
    # lanes j3*16+oc
    t2 = jnp.tanh(band_matmul(h1, m2_ref, 2) + b2_ref[...])
    # pool2: valid rows 32i+4k2 (k2<4), lanes j4*16+oc
    q2 = pool2x2(t2, 2, 16, sc2_ref[...])
    q2_ref[0:q2.shape[0], :] = q2              # stage in VMEM for strided gather

    # fc1 (256->120, padded to 128 lanes): gather each image's 4 pooled rows
    # with tile-aligned stride-32 reads and sum 4 (bb,64)x(64,128) matmuls.
    g = q2_ref[pl.ds(0, bb, stride=_PERIOD), :]
    acc = jnp.dot(g, w1_ref[0:64, :], preferred_element_type=f32)
    for k2 in range(1, 4):
        g = q2_ref[pl.ds(4 * k2, bb, stride=_PERIOD), :]
        acc = acc + jnp.dot(g, w1_ref[64 * k2:64 * (k2 + 1), :],
                            preferred_element_type=f32)
    t3 = jnp.tanh(acc + c1_ref[...])                                  # (bb,128)
    t4 = jnp.tanh(jnp.dot(t3, w2_ref[...], preferred_element_type=f32)
                  + c2_ref[...])
    logits = jnp.dot(t4, w3_ref[...], preferred_element_type=f32) + c3_ref[...]

    # softmax over 128 lanes; padded logit lanes carry a -1e30 bias -> exp == 0
    z = logits - jnp.max(logits, axis=1, keepdims=True)
    e = jnp.exp(z)
    p = e * pl.reciprocal(jnp.sum(e, axis=1, keepdims=True), approx=False)
    out_ref[...] = p                            # single lane-dense (bb,128) store


# ----------------------------------------------------------------------------
# One-time parameter packing (host-side numpy; runs once, not per forward)
#   sigmoid(z) = 0.5*tanh(0.5 z) + 0.5 ; the 0.5 argument scale and the output
#   affine are folded into the packed weights/biases so the kernel only calls
#   tanh(matmul + bias).
# ----------------------------------------------------------------------------

def prepare_params(params):
    f32 = np.float32
    w1 = np.asarray(params["conv1_w"], f32)      # (6, 1, 5, 5)
    b1 = np.asarray(params["conv1_b"], f32)
    w2 = np.asarray(params["conv2_w"], f32)      # (16, 6, 5, 5)
    b2 = np.asarray(params["conv2_b"], f32)
    fw1 = np.asarray(params["fc1_w"], f32)       # (120, 256)
    fb1 = np.asarray(params["fc1_b"], f32)
    fw2 = np.asarray(params["fc2_w"], f32)       # (84, 120)
    fb2 = np.asarray(params["fc2_b"], f32)
    fw3 = np.asarray(params["fc3_w"], f32)       # (10, 84)
    fb3 = np.asarray(params["fc3_b"], f32)

    # conv1 banded matrices (x0.5 tanh-argument fold): m1[kh][j+kw, j*6+oc]
    m1 = np.zeros((5, 28, 144), f32)
    for kh in range(5):
        for kw in range(5):
            for j in range(24):
                m1[kh, j + kw, j * 6:(j + 1) * 6] = 0.5 * w1[:, 0, kh, kw]
    b1row = np.tile(0.5 * b1, 24)[None, :]                       # (1, 144)

    # conv2 banded (x0.25: 0.5 from prev sigmoid affine, 0.5 from tanh argument)
    m2 = np.zeros((5, 72, 128), f32)
    for kh in range(5):
        for kw in range(5):
            for j3 in range(8):
                j = j3 + kw
                m2[kh, j * 6:(j + 1) * 6,
                   j3 * 16:(j3 + 1) * 16] = 0.25 * w2[:, :, kh, kw].T
    b2row = np.tile(0.5 * b2 + 0.25 * w2.sum(axis=(1, 2, 3)), 8)[None, :]

    # exact 0/1 lane-selection matrices for the 2x2 max-pools (kept f32/exact)
    ci = np.arange(72)
    sc1 = np.zeros((138, 72), f32)
    sc1[2 * ci - ci % 6, ci] = 1.0
    ci = np.arange(64)
    sc2 = np.zeros((112, 64), f32)
    sc2[2 * ci - ci % 16, ci] = 1.0

    # fc1: kernel flatten order k2*64 + j4*16 + oc vs PyTorch oc*16 + k2*4 + j4,
    # folded into the packed weight; pad 120 -> 128 output lanes.
    w1p = np.zeros((256, 128), f32)
    for k2 in range(4):
        for j4 in range(4):
            for oc in range(16):
                w1p[k2 * 64 + j4 * 16 + oc, :120] = \
                    0.25 * fw1[:, oc * 16 + k2 * 4 + j4]
    c1p = np.zeros((1, 128), f32)
    c1p[0, :120] = 0.5 * fb1 + 0.25 * fw1.sum(axis=1)

    w2p = np.zeros((128, 128), f32)
    w2p[:120, :84] = 0.25 * fw2.T
    c2p = np.zeros((1, 128), f32)
    c2p[0, :84] = 0.5 * fb2 + 0.25 * fw2.sum(axis=1)

    w3p = np.zeros((128, 128), f32)
    w3p[:84, :10] = 0.5 * fw3.T
    c3p = np.full((1, 128), -1e30, f32)          # mask padded logit lanes (f32)
    c3p[0, :10] = fb3 + 0.5 * fw3.sum(axis=1)

    bf = jnp.bfloat16
    return {
        "m1": jnp.asarray(m1, bf), "b1": jnp.asarray(b1row),
        "m2": jnp.asarray(m2, bf), "b2": jnp.asarray(b2row),
        "sc1": jnp.asarray(sc1), "sc2": jnp.asarray(sc2),
        "w1": jnp.asarray(w1p), "c1": jnp.asarray(c1p),
        "w2": jnp.asarray(w2p), "c2": jnp.asarray(c2p),
        "w3": jnp.asarray(w3p), "c3": jnp.asarray(c3p),
    }


# ----------------------------------------------------------------------------
# pallas_call wrapper
# ----------------------------------------------------------------------------

def _const_index_map(ndim):
    return lambda b: (0,) * ndim


@functools.partial(jax.jit, static_argnames=("block_b",))
def lenet1_forward(x, prep, block_b=64):
    """x: (B, 1, 28, 28) f32 -> (B, 10) softmax probabilities."""
    bsz = x.shape[0]
    bb = bsz if bsz <= block_b else block_b
    pad = (-bsz) % bb
    bpad = bsz + pad
    n_blocks = bpad // bb
    la = bb * _PERIOD

    xs = x.reshape(bsz, 28, 28)
    if pad:
        xs = jnp.concatenate([xs, jnp.zeros((pad, 28, 28), xs.dtype)], axis=0)
    # pad each image 28 -> 32 rows (sublane-tile aligned period), cast to bf16
    # once, and stack the block along sublanes: image i occupies rows 32i..32i+27.
    xs = jnp.pad(xs, ((0, 0), (0, _PERIOD - 28), (0, 0)))
    xs = xs.astype(jnp.bfloat16).reshape(bpad * _PERIOD, 28)

    weights = [prep[k] for k in _WEIGHT_KEYS]
    w_specs = [pl.BlockSpec(tuple(w.shape), _const_index_map(w.ndim))
               for w in weights]

    flops_blk = 2 * (5 * (la - 4) * 28 * 144 + (la - 5) * 138 * 72
                     + 5 * (la - 13) * 72 * 128 + (la - 15) * 112 * 64
                     + 4 * bb * 64 * 128 + 2 * bb * 128 * 128)
    transc_blk = (la - 4) * 144 + (la - 13) * 128 + 3 * bb * 128
    bytes_w = sum(int(np.prod(w.shape)) * w.dtype.itemsize for w in weights)
    cost = pl.CostEstimate(
        flops=int(flops_blk * n_blocks),
        transcendentals=int(transc_blk * n_blocks),
        bytes_accessed=int(xs.size * xs.dtype.itemsize + bpad * 128 * 4 + bytes_w))

    out = pl.pallas_call(
        _lenet1_kernel,
        out_shape=jax.ShapeDtypeStruct((bpad, 128), jnp.float32),
        grid=(n_blocks,),
        in_specs=[pl.BlockSpec((la, 28), lambda b: (b, 0))] + w_specs,
        out_specs=pl.BlockSpec((bb, 128), lambda b: (b, 0)),
        scratch_shapes=[pltpu.VMEM((la, 64), jnp.float32)],
        compiler_params=pltpu.CompilerParams(
            dimension_semantics=("parallel",),
            vmem_limit_bytes=None if bb <= 64 else 48 * 1024 * 1024),
        cost_estimate=cost,
    )(xs, *weights)
    return out[:bsz, :10]


# ----------------------------------------------------------------------------
# Pure-JAX (XLA, f32) reference of the PyTorch module, for validation
# ----------------------------------------------------------------------------

def lenet1_reference(x, params):
    def conv(inp, w, b):
        y = lax.conv_general_dilated(inp, w, (1, 1), "VALID",
                                     dimension_numbers=("NCHW", "OIHW", "NCHW"))
        return y + b[None, :, None, None]

    def pool(a):
        return lax.reduce_window(a, -jnp.inf, lax.max,
                                 (1, 1, 2, 2), (1, 1, 2, 2), "VALID")

    h = pool(jax.nn.sigmoid(conv(x, params["conv1_w"], params["conv1_b"])))
    h = pool(jax.nn.sigmoid(conv(h, params["conv2_w"], params["conv2_b"])))
    h = h.reshape(h.shape[0], -1)
    h = jax.nn.sigmoid(h @ params["fc1_w"].T + params["fc1_b"])
    h = jax.nn.sigmoid(h @ params["fc2_w"].T + params["fc2_b"])
    return jax.nn.softmax(h @ params["fc3_w"].T + params["fc3_b"], axis=1)


# ----------------------------------------------------------------------------
# Deterministic parameter init (PyTorch-style uniform +/- 1/sqrt(fan_in))
# ----------------------------------------------------------------------------

def init_params(key):
    def u(k, shape, fan_in):
        bound = 1.0 / (fan_in ** 0.5)
        return jax.random.uniform(k, shape, jnp.float32, -bound, bound)

    ks = jax.random.split(key, 10)
    return {
        "conv1_w": u(ks[0], (6, 1, 5, 5), 25),
        "conv1_b": u(ks[1], (6,), 25),
        "conv2_w": u(ks[2], (16, 6, 5, 5), 150),
        "conv2_b": u(ks[3], (16,), 150),
        "fc1_w": u(ks[4], (120, 256), 256),
        "fc1_b": u(ks[5], (120,), 256),
        "fc2_w": u(ks[6], (84, 120), 120),
        "fc2_b": u(ks[7], (84,), 120),
        "fc3_w": u(ks[8], (10, 84), 84),
        "fc3_b": u(ks[9], (10,), 84),
    }


if __name__ == "__main__":
    root = jax.random.PRNGKey(0)
    k_params, k_x = jax.random.split(root)

    params = init_params(k_params)
    prep = prepare_params(params)

    # LeNet1 geometry forces 28x28 single-channel input (fc1 expects 16*4*4).
    x = jax.random.normal(k_x, (2, 1, 28, 28), dtype=jnp.float32)

    out = jax.block_until_ready(lenet1_forward(x, prep))
    ref = jax.block_until_ready(lenet1_reference(x, params))

    assert out.shape == (2, 10)
    assert bool(jnp.all(jnp.isfinite(out)))
    # softmax rows sum to 1 (exact reciprocal -> tight tolerance)
    assert bool(jnp.allclose(jnp.sum(out, axis=1), 1.0, atol=2e-3))
    # bf16 conv-weight matmuls -> compare against f32 reference loosely
    max_err = float(jnp.max(jnp.abs(out - ref)))
    assert max_err < 5e-2, f"mismatch vs reference: {max_err}"
    print("KERNEL_OK")
</pallas_src>

<mosaic_0001>
module attributes {stable_mosaic.version = 11 : i64} {
  func.func @_lenet1_kernel(%arg0: i32, %arg1: memref<64x28xbf16, #tpu.memory_space<vmem>>, %arg2: memref<5x28x144xbf16, #tpu.memory_space<vmem>>, %arg3: memref<1x144xf32, #tpu.memory_space<vmem>>, %arg4: memref<5x72x128xbf16, #tpu.memory_space<vmem>>, %arg5: memref<1x128xf32, #tpu.memory_space<vmem>>, %arg6: memref<138x72xf32, #tpu.memory_space<vmem>>, %arg7: memref<112x64xf32, #tpu.memory_space<vmem>>, %arg8: memref<256x128xf32, #tpu.memory_space<vmem>>, %arg9: memref<1x128xf32, #tpu.memory_space<vmem>>, %arg10: memref<128x128xf32, #tpu.memory_space<vmem>>, %arg11: memref<1x128xf32, #tpu.memory_space<vmem>>, %arg12: memref<128x128xf32, #tpu.memory_space<vmem>>, %arg13: memref<1x128xf32, #tpu.memory_space<vmem>>, %arg14: memref<2x128xf32, #tpu.memory_space<vmem>>, %arg15: memref<64x64xf32, #tpu.memory_space<vmem>>) attributes {dimension_semantics = [#tpu.dimension_semantics<parallel>], iteration_bounds = array<i64: 1>, scalar_prefetch = 0 : i64, scratch_operands = 1 : i64, tpu.core_type = #tpu.core_type<tc>, window_params = [{transform_indices = @transform_0, window_bounds = array<i64: 64, 28>}, {pipeline_mode = #tpu.pipeline_mode<synchronous>, transform_indices = @transform_1, window_bounds = array<i64: 5, 28, 144>}, {pipeline_mode = #tpu.pipeline_mode<synchronous>, transform_indices = @transform_2, window_bounds = array<i64: 1, 144>}, {pipeline_mode = #tpu.pipeline_mode<synchronous>, transform_indices = @transform_3, window_bounds = array<i64: 5, 72, 128>}, {pipeline_mode = #tpu.pipeline_mode<synchronous>, transform_indices = @transform_4, window_bounds = array<i64: 1, 128>}, {pipeline_mode = #tpu.pipeline_mode<synchronous>, transform_indices = @transform_5, window_bounds = array<i64: 138, 72>}, {pipeline_mode = #tpu.pipeline_mode<synchronous>, transform_indices = @transform_6, window_bounds = array<i64: 112, 64>}, {pipeline_mode = #tpu.pipeline_mode<synchronous>, transform_indices = @transform_7, window_bounds = array<i64: 256, 128>}, {pipeline_mode = #tpu.pipeline_mode<synchronous>, transform_indices = @transform_8, window_bounds = array<i64: 1, 128>}, {pipeline_mode = #tpu.pipeline_mode<synchronous>, transform_indices = @transform_9, window_bounds = array<i64: 128, 128>}, {pipeline_mode = #tpu.pipeline_mode<synchronous>, transform_indices = @transform_10, window_bounds = array<i64: 1, 128>}, {pipeline_mode = #tpu.pipeline_mode<synchronous>, transform_indices = @transform_11, window_bounds = array<i64: 128, 128>}, {pipeline_mode = #tpu.pipeline_mode<synchronous>, transform_indices = @transform_12, window_bounds = array<i64: 1, 128>}, {transform_indices = @transform_13, window_bounds = array<i64: 2, 128>}]} {
    %c0 = arith.constant 0 : index
    %c0_0 = arith.constant 0 : index
    %0 = vector.load %arg1[%c0, %c0_0] : memref<64x28xbf16, #tpu.memory_space<vmem>>, vector<64x28xbf16>
    %1 = vector.extract_strided_slice %0 {offsets = [0, 0], sizes = [60, 28], strides = [1, 1]} : vector<64x28xbf16> to vector<60x28xbf16>
    %c0_1 = arith.constant 0 : index
    %c0_2 = arith.constant 0 : index
    %c0_3 = arith.constant 0 : index
    %2 = vector.load %arg2[%c0_1, %c0_2, %c0_3] : memref<5x28x144xbf16, #tpu.memory_space<vmem>>, vector<1x28x144xbf16>
    %3 = vector.shape_cast %2 : vector<1x28x144xbf16> to vector<28x144xbf16>
    %cst = arith.constant dense<0.000000e+00> : vector<60x144xf32>
    %4 = tpu.matmul %1, %3, %cst {dimension_numbers = #tpu.dot_dimension_numbers<[1], [0], [0], [1], [0, 0, 1, 1], [], []>} : vector<60x28xbf16>, vector<28x144xbf16>, vector<60x144xf32> -> vector<60x144xf32>
    %5 = vector.extract_strided_slice %0 {offsets = [1, 0], sizes = [60, 28], strides = [1, 1]} : vector<64x28xbf16> to vector<60x28xbf16>
    %c1 = arith.constant 1 : index
    %c0_4 = arith.constant 0 : index
    %c0_5 = arith.constant 0 : index
    %6 = vector.load %arg2[%c1, %c0_4, %c0_5] : memref<5x28x144xbf16, #tpu.memory_space<vmem>>, vector<1x28x144xbf16>
    %7 = vector.shape_cast %6 : vector<1x28x144xbf16> to vector<28x144xbf16>
    %cst_6 = arith.constant dense<0.000000e+00> : vector<60x144xf32>
    %8 = tpu.matmul %5, %7, %cst_6 {dimension_numbers = #tpu.dot_dimension_numbers<[1], [0], [0], [1], [0, 0, 1, 1], [], []>} : vector<60x28xbf16>, vector<28x144xbf16>, vector<60x144xf32> -> vector<60x144xf32>
    %9 = arith.addf %4, %8 : vector<60x144xf32>
    %10 = vector.extract_strided_slice %0 {offsets = [2, 0], sizes = [60, 28], strides = [1, 1]} : vector<64x28xbf16> to vector<60x28xbf16>
    %c2 = arith.constant 2 : index
    %c0_7 = arith.constant 0 : index
    %c0_8 = arith.constant 0 : index
    %11 = vector.load %arg2[%c2, %c0_7, %c0_8] : memref<5x28x144xbf16, #tpu.memory_space<vmem>>, vector<1x28x144xbf16>
    %12 = vector.shape_cast %11 : vector<1x28x144xbf16> to vector<28x144xbf16>
    %cst_9 = arith.constant dense<0.000000e+00> : vector<60x144xf32>
    %13 = tpu.matmul %10, %12, %cst_9 {dimension_numbers = #tpu.dot_dimension_numbers<[1], [0], [0], [1], [0, 0, 1, 1], [], []>} : vector<60x28xbf16>, vector<28x144xbf16>, vector<60x144xf32> -> vector<60x144xf32>
    %14 = arith.addf %9, %13 : vector<60x144xf32>
    %15 = vector.extract_strided_slice %0 {offsets = [3, 0], sizes = [60, 28], strides = [1, 1]} : vector<64x28xbf16> to vector<60x28xbf16>
    %c3 = arith.constant 3 : index
    %c0_10 = arith.constant 0 : index
    %c0_11 = arith.constant 0 : index
    %16 = vector.load %arg2[%c3, %c0_10, %c0_11] : memref<5x28x144xbf16, #tpu.memory_space<vmem>>, vector<1x28x144xbf16>
    %17 = vector.shape_cast %16 : vector<1x28x144xbf16> to vector<28x144xbf16>
    %cst_12 = arith.constant dense<0.000000e+00> : vector<60x144xf32>
    %18 = tpu.matmul %15, %17, %cst_12 {dimension_numbers = #tpu.dot_dimension_numbers<[1], [0], [0], [1], [0, 0, 1, 1], [], []>} : vector<60x28xbf16>, vector<28x144xbf16>, vector<60x144xf32> -> vector<60x144xf32>
    %19 = arith.addf %14, %18 : vector<60x144xf32>
    %20 = vector.extract_strided_slice %0 {offsets = [4, 0], sizes = [60, 28], strides = [1, 1]} : vector<64x28xbf16> to vector<60x28xbf16>
    %c4 = arith.constant 4 : index
    %c0_13 = arith.constant 0 : index
    %c0_14 = arith.constant 0 : index
    %21 = vector.load %arg2[%c4, %c0_13, %c0_14] : memref<5x28x144xbf16, #tpu.memory_space<vmem>>, vector<1x28x144xbf16>
    %22 = vector.shape_cast %21 : vector<1x28x144xbf16> to vector<28x144xbf16>
    %cst_15 = arith.constant dense<0.000000e+00> : vector<60x144xf32>
    %23 = tpu.matmul %20, %22, %cst_15 {dimension_numbers = #tpu.dot_dimension_numbers<[1], [0], [0], [1], [0, 0, 1, 1], [], []>} : vector<60x28xbf16>, vector<28x144xbf16>, vector<60x144xf32> -> vector<60x144xf32>
    %24 = arith.addf %19, %23 : vector<60x144xf32>
    %c0_16 = arith.constant 0 : index
    %c0_17 = arith.constant 0 : index
    %25 = vector.load %arg3[%c0_16, %c0_17] : memref<1x144xf32, #tpu.memory_space<vmem>>, vector<1x144xf32>
    %26 = vector.broadcast %25 : vector<1x144xf32> to vector<60x144xf32>
    %27 = arith.addf %24, %26 : vector<60x144xf32>
    %28 = math.tanh %27 : vector<60x144xf32>
    %c0_18 = arith.constant 0 : index
    %c0_19 = arith.constant 0 : index
    %29 = vector.load %arg6[%c0_18, %c0_19] : memref<138x72xf32, #tpu.memory_space<vmem>>, vector<138x72xf32>
    %30 = vector.extract_strided_slice %28 {offsets = [0, 0], sizes = [59, 144], strides = [1, 1]} : vector<60x144xf32> to vector<59x144xf32>
    %31 = vector.extract_strided_slice %28 {offsets = [1, 0], sizes = [59, 144], strides = [1, 1]} : vector<60x144xf32> to vector<59x144xf32>
    %32 = arith.maximumf %30, %31 : vector<59x144xf32>
    %33 = vector.extract_strided_slice %32 {offsets = [0, 0], sizes = [59, 138], strides = [1, 1]} : vector<59x144xf32> to vector<59x138xf32>
    %34 = vector.extract_strided_slice %32 {offsets = [0, 6], sizes = [59, 138], strides = [1, 1]} : vector<59x144xf32> to vector<59x138xf32>
    %35 = arith.maximumf %33, %34 : vector<59x138xf32>
    %cst_20 = arith.constant dense<0.000000e+00> : vector<59x72xf32>
    %36 = tpu.matmul %35, %29, %cst_20 {dimension_numbers = #tpu.dot_dimension_numbers<[1], [0], [0], [1], [0, 0, 1, 1], [], []>} : vector<59x138xf32>, vector<138x72xf32>, vector<59x72xf32> -> vector<59x72xf32>
    %37 = arith.truncf %36 : vector<59x72xf32> to vector<59x72xbf16>
    %38 = vector.extract_strided_slice %37 {offsets = [0, 0], sizes = [51, 72], strides = [1, 1]} : vector<59x72xbf16> to vector<51x72xbf16>
    %c0_21 = arith.constant 0 : index
    %c0_22 = arith.constant 0 : index
    %c0_23 = arith.constant 0 : index
    %39 = vector.load %arg4[%c0_21, %c0_22, %c0_23] : memref<5x72x128xbf16, #tpu.memory_space<vmem>>, vector<1x72x128xbf16>
    %40 = vector.shape_cast %39 : vector<1x72x128xbf16> to vector<72x128xbf16>
    %cst_24 = arith.constant dense<0.000000e+00> : vector<51x128xf32>
    %41 = tpu.matmul %38, %40, %cst_24 {dimension_numbers = #tpu.dot_dimension_numbers<[1], [0], [0], [1], [0, 0, 1, 1], [], []>} : vector<51x72xbf16>, vector<72x128xbf16>, vector<51x128xf32> -> vector<51x128xf32>
    %42 = vector.extract_strided_slice %37 {offsets = [2, 0], sizes = [51, 72], strides = [1, 1]} : vector<59x72xbf16> to vector<51x72xbf16>
    %c1_25 = arith.constant 1 : index
    %c0_26 = arith.constant 0 : index
    %c0_27 = arith.constant 0 : index
    %43 = vector.load %arg4[%c1_25, %c0_26, %c0_27] : memref<5x72x128xbf16, #tpu.memory_space<vmem>>, vector<1x72x128xbf16>
    %44 = vector.shape_cast %43 : vector<1x72x128xbf16> to vector<72x128xbf16>
    %cst_28 = arith.constant dense<0.000000e+00> : vector<51x128xf32>
    %45 = tpu.matmul %42, %44, %cst_28 {dimension_numbers = #tpu.dot_dimension_numbers<[1], [0], [0], [1], [0, 0, 1, 1], [], []>} : vector<51x72xbf16>, vector<72x128xbf16>, vector<51x128xf32> -> vector<51x128xf32>
    %46 = arith.addf %41, %45 : vector<51x128xf32>
    %47 = vector.extract_strided_slice %37 {offsets = [4, 0], sizes = [51, 72], strides = [1, 1]} : vector<59x72xbf16> to vector<51x72xbf16>
    %c2_29 = arith.constant 2 : index
    %c0_30 = arith.constant 0 : index
    %c0_31 = arith.constant 0 : index
    %48 = vector.load %arg4[%c2_29, %c0_30, %c0_31] : memref<5x72x128xbf16, #tpu.memory_space<vmem>>, vector<1x72x128xbf16>
    %49 = vector.shape_cast %48 : vector<1x72x128xbf16> to vector<72x128xbf16>
    %cst_32 = arith.constant dense<0.000000e+00> : vector<51x128xf32>
    %50 = tpu.matmul %47, %49, %cst_32 {dimension_numbers = #tpu.dot_dimension_numbers<[1], [0], [0], [1], [0, 0, 1, 1], [], []>} : vector<51x72xbf16>, vector<72x128xbf16>, vector<51x128xf32> -> vector<51x128xf32>
    %51 = arith.addf %46, %50 : vector<51x128xf32>
    %52 = vector.extract_strided_slice %37 {offsets = [6, 0], sizes = [51, 72], strides = [1, 1]} : vector<59x72xbf16> to vector<51x72xbf16>
    %c3_33 = arith.constant 3 : index
    %c0_34 = arith.constant 0 : index
    %c0_35 = arith.constant 0 : index
    %53 = vector.load %arg4[%c3_33, %c0_34, %c0_35] : memref<5x72x128xbf16, #tpu.memory_space<vmem>>, vector<1x72x128xbf16>
    %54 = vector.shape_cast %53 : vector<1x72x128xbf16> to vector<72x128xbf16>
    %cst_36 = arith.constant dense<0.000000e+00> : vector<51x128xf32>
    %55 = tpu.matmul %52, %54, %cst_36 {dimension_numbers = #tpu.dot_dimension_numbers<[1], [0], [0], [1], [0, 0, 1, 1], [], []>} : vector<51x72xbf16>, vector<72x128xbf16>, vector<51x128xf32> -> vector<51x128xf32>
    %56 = arith.addf %51, %55 : vector<51x128xf32>
    %57 = vector.extract_strided_slice %37 {offsets = [8, 0], sizes = [51, 72], strides = [1, 1]} : vector<59x72xbf16> to vector<51x72xbf16>
    %c4_37 = arith.constant 4 : index
    %c0_38 = arith.constant 0 : index
    %c0_39 = arith.constant 0 : index
    %58 = vector.load %arg4[%c4_37, %c0_38, %c0_39] : memref<5x72x128xbf16, #tpu.memory_space<vmem>>, vector<1x72x128xbf16>
    %59 = vector.shape_cast %58 : vector<1x72x128xbf16> to vector<72x128xbf16>
    %cst_40 = arith.constant dense<0.000000e+00> : vector<51x128xf32>
    %60 = tpu.matmul %57, %59, %cst_40 {dimension_numbers = #tpu.dot_dimension_numbers<[1], [0], [0], [1], [0, 0, 1, 1], [], []>} : vector<51x72xbf16>, vector<72x128xbf16>, vector<51x128xf32> -> vector<51x128xf32>
    %61 = arith.addf %56, %60 : vector<51x128xf32>
    %c0_41 = arith.constant 0 : index
    %c0_42 = arith.constant 0 : index
    %62 = vector.load %arg5[%c0_41, %c0_42] : memref<1x128xf32, #tpu.memory_space<vmem>>, vector<1x128xf32>
    %63 = vector.broadcast %62 : vector<1x128xf32> to vector<51x128xf32>
    %64 = arith.addf %61, %63 : vector<51x128xf32>
    %65 = math.tanh %64 : vector<51x128xf32>
    %c0_43 = arith.constant 0 : index
    %c0_44 = arith.constant 0 : index
    %66 = vector.load %arg7[%c0_43, %c0_44] : memref<112x64xf32, #tpu.memory_space<vmem>>, vector<112x64xf32>
    %67 = vector.extract_strided_slice %65 {offsets = [0, 0], sizes = [49, 128], strides = [1, 1]} : vector<51x128xf32> to vector<49x128xf32>
    %68 = vector.extract_strided_slice %65 {offsets = [2, 0], sizes = [49, 128], strides = [1, 1]} : vector<51x128xf32> to vector<49x128xf32>
    %69 = arith.maximumf %67, %68 : vector<49x128xf32>
    %70 = vector.extract_strided_slice %69 {offsets = [0, 0], sizes = [49, 112], strides = [1, 1]} : vector<49x128xf32> to vector<49x112xf32>
    %71 = vector.extract_strided_slice %69 {offsets = [0, 16], sizes = [49, 112], strides = [1, 1]} : vector<49x128xf32> to vector<49x112xf32>
    %72 = arith.maximumf %70, %71 : vector<49x112xf32>
    %cst_45 = arith.constant dense<0.000000e+00> : vector<49x64xf32>
    %73 = tpu.matmul %72, %66, %cst_45 {dimension_numbers = #tpu.dot_dimension_numbers<[1], [0], [0], [1], [0, 0, 1, 1], [], []>} : vector<49x112xf32>, vector<112x64xf32>, vector<49x64xf32> -> vector<49x64xf32>
    %c0_46 = arith.constant 0 : index
    %c0_47 = arith.constant 0 : index
    %74 = vector.load %arg15[%c0_46, %c0_47] : memref<64x64xf32, #tpu.memory_space<vmem>>, vector<49x64xf32>
    tpu.vector_store %arg15[%c0_46, %c0_47], %73 {strides = array<i32>} : memref<64x64xf32, #tpu.memory_space<vmem>>, vector<49x64xf32>,
    %c0_48 = arith.constant 0 : index
    %c0_49 = arith.constant 0 : index
    %75 = tpu.strided_load %arg15[%c0_48, %c0_49] {strides = array<i32: 32, 1>} : memref<64x64xf32, #tpu.memory_space<vmem>>, vector<2x64xf32>
    %c0_50 = arith.constant 0 : index
    %c0_51 = arith.constant 0 : index
    %76 = vector.load %arg8[%c0_50, %c0_51] : memref<256x128xf32, #tpu.memory_space<vmem>>, vector<64x128xf32>
    %cst_52 = arith.constant dense<0.000000e+00> : vector<2x128xf32>
    %77 = tpu.matmul %75, %76, %cst_52 {dimension_numbers = #tpu.dot_dimension_numbers<[1], [0], [0], [1], [0, 0, 1, 1], [], []>} : vector<2x64xf32>, vector<64x128xf32>, vector<2x128xf32> -> vector<2x128xf32>
    %c4_53 = arith.constant 4 : index
    %c0_54 = arith.constant 0 : index
    %78 = tpu.strided_load %arg15[%c4_53, %c0_54] {strides = array<i32: 32, 1>} : memref<64x64xf32, #tpu.memory_space<vmem>>, vector<2x64xf32>
    %c64 = arith.constant 64 : index
    %c0_55 = arith.constant 0 : index
    %79 = vector.load %arg8[%c64, %c0_55] : memref<256x128xf32, #tpu.memory_space<vmem>>, vector<64x128xf32>
    %cst_56 = arith.constant dense<0.000000e+00> : vector<2x128xf32>
    %80 = tpu.matmul %78, %79, %cst_56 {dimension_numbers = #tpu.dot_dimension_numbers<[1], [0], [0], [1], [0, 0, 1, 1], [], []>} : vector<2x64xf32>, vector<64x128xf32>, vector<2x128xf32> -> vector<2x128xf32>
    %81 = arith.addf %77, %80 : vector<2x128xf32>
    %c8 = arith.constant 8 : index
    %c0_57 = arith.constant 0 : index
    %82 = tpu.strided_load %arg15[%c8, %c0_57] {strides = array<i32: 32, 1>} : memref<64x64xf32, #tpu.memory_space<vmem>>, vector<2x64xf32>
    %c128 = arith.constant 128 : index
    %c0_58 = arith.constant 0 : index
    %83 = vector.load %arg8[%c128, %c0_58] : memref<256x128xf32, #tpu.memory_space<vmem>>, vector<64x128xf32>
    %cst_59 = arith.constant dense<0.000000e+00> : vector<2x128xf32>
    %84 = tpu.matmul %82, %83, %cst_59 {dimension_numbers = #tpu.dot_dimension_numbers<[1], [0], [0], [1], [0, 0, 1, 1], [], []>} : vector<2x64xf32>, vector<64x128xf32>, vector<2x128xf32> -> vector<2x128xf32>
    %85 = arith.addf %81, %84 : vector<2x128xf32>
    %c12 = arith.constant 12 : index
    %c0_60 = arith.constant 0 : index
    %86 = tpu.strided_load %arg15[%c12, %c0_60] {strides = array<i32: 32, 1>} : memref<64x64xf32, #tpu.memory_space<vmem>>, vector<2x64xf32>
    %c192 = arith.constant 192 : index
    %c0_61 = arith.constant 0 : index
    %87 = vector.load %arg8[%c192, %c0_61] : memref<256x128xf32, #tpu.memory_space<vmem>>, vector<64x128xf32>
    %cst_62 = arith.constant dense<0.000000e+00> : vector<2x128xf32>
    %88 = tpu.matmul %86, %87, %cst_62 {dimension_numbers = #tpu.dot_dimension_numbers<[1], [0], [0], [1], [0, 0, 1, 1], [], []>} : vector<2x64xf32>, vector<64x128xf32>, vector<2x128xf32> -> vector<2x128xf32>
    %89 = arith.addf %85, %88 : vector<2x128xf32>
    %c0_63 = arith.constant 0 : index
    %c0_64 = arith.constant 0 : index
    %90 = vector.load %arg9[%c0_63, %c0_64] : memref<1x128xf32, #tpu.memory_space<vmem>>, vector<1x128xf32>
    %91 = vector.broadcast %90 : vector<1x128xf32> to vector<2x128xf32>
    %92 = arith.addf %89, %91 : vector<2x128xf32>
    %93 = math.tanh %92 : vector<2x128xf32>
    %c0_65 = arith.constant 0 : index
    %c0_66 = arith.constant 0 : index
    %94 = vector.load %arg10[%c0_65, %c0_66] : memref<128x128xf32, #tpu.memory_space<vmem>>, vector<128x128xf32>
    %cst_67 = arith.constant dense<0.000000e+00> : vector<2x128xf32>
    %95 = tpu.matmul %93, %94, %cst_67 {dimension_numbers = #tpu.dot_dimension_numbers<[1], [0], [0], [1], [0, 0, 1, 1], [], []>} : vector<2x128xf32>, vector<128x128xf32>, vector<2x128xf32> -> vector<2x128xf32>
    %c0_68 = arith.constant 0 : index
    %c0_69 = arith.constant 0 : index
    %96 = vector.load %arg11[%c0_68, %c0_69] : memref<1x128xf32, #tpu.memory_space<vmem>>, vector<1x128xf32>
    %97 = vector.broadcast %96 : vector<1x128xf32> to vector<2x128xf32>
    %98 = arith.addf %95, %97 : vector<2x128xf32>
    %99 = math.tanh %98 : vector<2x128xf32>
    %c0_70 = arith.constant 0 : index
    %c0_71 = arith.constant 0 : index
    %100 = vector.load %arg12[%c0_70, %c0_71] : memref<128x128xf32, #tpu.memory_space<vmem>>, vector<128x128xf32>
    %cst_72 = arith.constant dense<0.000000e+00> : vector<2x128xf32>
    %101 = tpu.matmul %99, %100, %cst_72 {dimension_numbers = #tpu.dot_dimension_numbers<[1], [0], [0], [1], [0, 0, 1, 1], [], []>} : vector<2x128xf32>, vector<128x128xf32>, vector<2x128xf32> -> vector<2x128xf32>
    %c0_73 = arith.constant 0 : index
    %c0_74 = arith.constant 0 : index
    %102 = vector.load %arg13[%c0_73, %c0_74] : memref<1x128xf32, #tpu.memory_space<vmem>>, vector<1x128xf32>
    %103 = vector.broadcast %102 : vector<1x128xf32> to vector<2x128xf32>
    %104 = arith.addf %101, %103 : vector<2x128xf32>
    %cst_75 = arith.constant dense<0xFF800000> : vector<2xf32>
    %105 = vector.multi_reduction <maximumf>, %104, %cst_75 [1] : vector<2x128xf32> to vector<2xf32>
    %106 = vector.shape_cast %105 : vector<2xf32> to vector<2x1xf32>
    %107 = vector.broadcast %106 : vector<2x1xf32> to vector<2x128xf32>
    %108 = arith.subf %104, %107 : vector<2x128xf32>
    %109 = math.exp %108 : vector<2x128xf32>
    %cst_76 = arith.constant dense<0.000000e+00> : vector<2xf32>
    %110 = vector.multi_reduction <add>, %109, %cst_76 [1] : vector<2x128xf32> to vector<2xf32>
    %111 = vector.shape_cast %110 : vector<2xf32> to vector<2x1xf32>
    %112 = tpu.reciprocal %111 : vector<2x1xf32> -> vector<2x1xf32>
    %113 = vector.broadcast %112 : vector<2x1xf32> to vector<2x128xf32>
    %114 = arith.mulf %109, %113 : vector<2x128xf32>
    %c0_77 = arith.constant 0 : index
    %c0_78 = arith.constant 0 : index
    %115 = vector.load %arg14[%c0_77, %c0_78] : memref<2x128xf32, #tpu.memory_space<vmem>>, vector<2x128xf32>
    tpu.vector_store %arg14[%c0_77, %c0_78], %114 {strides = array<i32>} : memref<2x128xf32, #tpu.memory_space<vmem>>, vector<2x128xf32>,
    return
  }
  func.func @transform_0(%arg0: i32) -> (i32, i32) {
    %c0_i32 = arith.constant 0 : i32
    %c0_i32_0 = arith.constant 0 : i32
    return %arg0, %c0_i32 : i32, i32
  }
  func.func @transform_1(%arg0: i32) -> (i32, i32, i32) {
    %c0_i32 = arith.constant 0 : i32
    %c0_i32_0 = arith.constant 0 : i32
    %c0_i32_1 = arith.constant 0 : i32
    %c0_i32_2 = arith.constant 0 : i32
    return %c0_i32, %c0_i32_0, %c0_i32_1 : i32, i32, i32
  }
  func.func @transform_2(%arg0: i32) -> (i32, i32) {
    %c0_i32 = arith.constant 0 : i32
    %c0_i32_0 = arith.constant 0 : i32
    %c0_i32_1 = arith.constant 0 : i32
    return %c0_i32, %c0_i32_0 : i32, i32
  }
  func.func @transform_3(%arg0: i32) -> (i32, i32, i32) {
    %c0_i32 = arith.constant 0 : i32
    %c0_i32_0 = arith.constant 0 : i32
    %c0_i32_1 = arith.constant 0 : i32
    %c0_i32_2 = arith.constant 0 : i32
    return %c0_i32, %c0_i32_0, %c0_i32_1 : i32, i32, i32
  }
  func.func @transform_4(%arg0: i32) -> (i32, i32) {
    %c0_i32 = arith.constant 0 : i32
    %c0_i32_0 = arith.constant 0 : i32
    %c0_i32_1 = arith.constant 0 : i32
    return %c0_i32, %c0_i32_0 : i32, i32
  }
  func.func @transform_5(%arg0: i32) -> (i32, i32) {
    %c0_i32 = arith.constant 0 : i32
    %c0_i32_0 = arith.constant 0 : i32
    %c0_i32_1 = arith.constant 0 : i32
    return %c0_i32, %c0_i32_0 : i32, i32
  }
  func.func @transform_6(%arg0: i32) -> (i32, i32) {
    %c0_i32 = arith.constant 0 : i32
    %c0_i32_0 = arith.constant 0 : i32
    %c0_i32_1 = arith.constant 0 : i32
    return %c0_i32, %c0_i32_0 : i32, i32
  }
  func.func @transform_7(%arg0: i32) -> (i32, i32) {
    %c0_i32 = arith.constant 0 : i32
    %c0_i32_0 = arith.constant 0 : i32
    %c0_i32_1 = arith.constant 0 : i32
    return %c0_i32, %c0_i32_0 : i32, i32
  }
  func.func @transform_8(%arg0: i32) -> (i32, i32) {
    %c0_i32 = arith.constant 0 : i32
    %c0_i32_0 = arith.constant 0 : i32
    %c0_i32_1 = arith.constant 0 : i32
    return %c0_i32, %c0_i32_0 : i32, i32
  }
  func.func @transform_9(%arg0: i32) -> (i32, i32) {
    %c0_i32 = arith.constant 0 : i32
    %c0_i32_0 = arith.constant 0 : i32
    %c0_i32_1 = arith.constant 0 : i32
    return %c0_i32, %c0_i32_0 : i32, i32
  }
  func.func @transform_10(%arg0: i32) -> (i32, i32) {
    %c0_i32 = arith.constant 0 : i32
    %c0_i32_0 = arith.constant 0 : i32
    %c0_i32_1 = arith.constant 0 : i32
    return %c0_i32, %c0_i32_0 : i32, i32
  }
  func.func @transform_11(%arg0: i32) -> (i32, i32) {
    %c0_i32 = arith.constant 0 : i32
    %c0_i32_0 = arith.constant 0 : i32
    %c0_i32_1 = arith.constant 0 : i32
    return %c0_i32, %c0_i32_0 : i32, i32
  }
  func.func @transform_12(%arg0: i32) -> (i32, i32) {
    %c0_i32 = arith.constant 0 : i32
    %c0_i32_0 = arith.constant 0 : i32
    %c0_i32_1 = arith.constant 0 : i32
    return %c0_i32, %c0_i32_0 : i32, i32
  }
  func.func @transform_13(%arg0: i32) -> (i32, i32) {
    %c0_i32 = arith.constant 0 : i32
    %c0_i32_0 = arith.constant 0 : i32
    return %arg0, %c0_i32 : i32, i32
  }
}

</mosaic_0001>

<llo_original>
// kernel: lenet1_forward.1
$region0: #{lenet1_forward.1}
  #allocation0 [shape = 'u32[]', space=smem, size = 0x4, offset = 0x4, fixed_abs, tag = 'smem constant byte address 0x4 - core index']
  #allocation1 [shape = 'u32[72,128]{1,0:T(1,128)}', space=vmem, size = 0x9000, scoped, tag = 'internal scratch']
  #allocation2 [shape = 'f32[64,64]{1,0:T(8,128)}', space=vmem, size = 0x8000, scoped, tag = 'scratch operand']
  %s0 = inlined_call_operand.vmem [shape: bf16[64,28], index: 0, kind: input, shape index: {}]
  %s1 = inlined_call_operand.hbm [shape: bf16[5,28,144], index: 1, kind: input, shape index: {}]
  %s2 = inlined_call_operand.vmem [shape: f32[1,144], index: 2, kind: input, shape index: {}]
  %s3 = inlined_call_operand.vmem [shape: bf16[5,72,128], index: 3, kind: input, shape index: {}]
  %s4 = inlined_call_operand.vmem [shape: f32[1,128], index: 4, kind: input, shape index: {}]
  %s5 = inlined_call_operand.hbm [shape: f32[138,72], index: 5, kind: input, shape index: {}]
  %s6 = inlined_call_operand.vmem [shape: f32[112,64], index: 6, kind: input, shape index: {}]
  %s7 = inlined_call_operand.vmem [shape: f32[256,128], index: 7, kind: input, shape index: {}]
  %s8 = inlined_call_operand.vmem [shape: f32[1,128], index: 8, kind: input, shape index: {}]
  %s9 = inlined_call_operand.hbm [shape: f32[128,128], index: 9, kind: input, shape index: {}]
  %s10 = inlined_call_operand.vmem [shape: f32[1,128], index: 10, kind: input, shape index: {}]
  %s11 = inlined_call_operand.hbm [shape: f32[128,128], index: 11, kind: input, shape index: {}]
  %s12 = inlined_call_operand.vmem [shape: f32[1,128], index: 12, kind: input, shape index: {}]
  %s13 = inlined_call_operand.hbm [shape: f32[2,128], index: 13, kind: output, shape index: {}]
  %s14 = sld [smem:[#allocation0]]
  $region78: #{lenet1_forward.1} parent=0
    _
  %s16 = ssub.s32 1, %s14
  %s17 = scalar_select 0, %s16, %s14
  $region1: #{lenet1_forward.1} parent=0
    #allocation3 [shape = 'u8[81920]{0}', space=vmem, size = 0x14000, scoped, tag = 'input window, operand 1, single buffered']
    #allocation4 [shape = 's32[1]{0}', space=sflag, size = 0x4, scoped, tag = 'scoped memory for lenet1_forward.1']
    #allocation5 [shape = 's32[1]{0}', space=sflag, size = 0x4, scoped, tag = 'scoped memory for lenet1_forward.1']
    #allocation6 [shape = 'u8[73728]{0}', space=vmem, size = 0x12000, scoped, tag = 'input window, operand 5, single buffered']
    #allocation7 [shape = 's32[1]{0}', space=sflag, size = 0x4, scoped, tag = 'scoped memory for lenet1_forward.1']
    #allocation8 [shape = 'u8[65536]{0}', space=vmem, size = 0x10000, scoped, tag = 'input window, operand 9, single buffered']
    #allocation9 [shape = 'u8[65536]{0}', space=vmem, size = 0x10000, scoped, tag = 'input window, operand 11, single buffered']
    #allocation10 [shape = 's32[1]{0}', space=sflag, size = 0x4, scoped, tag = 'scoped memory for lenet1_forward.1']
    #allocation11 [shape = 'u8[1024]{0}', space=vmem, size = 0x400, scoped, tag = 'output window, operand 0, single buffered']
    %18 = vsyncpa [#allocation4], 0
    %19 = vsyncpa [#allocation7], 0
    %20 = vsyncpa [#allocation10], 0
    %21 = vsyncpa [#allocation5], 0
    // Predicated region
    $region2: #{lenet1_forward.1} parent=1 // pred_check
      _
    $region3: #{lenet1_forward.1} parent=1 // pred_check_branch
      %23 = sbr.rel (0) target = $region5
    $region4: #{lenet1_forward.1} parent=1 // pred_region
      _
    $region5: #{lenet1_forward.1} parent=1 // pred_fallthru
      _
    // Predicated region
    $region6: #{lenet1_forward.1} parent=1 // pred_check
      _
    $region7: #{lenet1_forward.1} parent=1 // pred_check_branch
      %25 = sbr.rel (0) target = $region9
    $region8: #{lenet1_forward.1} parent=1 // pred_region
      %27 = vsyncadd [#allocation4], 0
      %s28 = sshll.u32 %s1, 4
      %s29 = int_to_ptr.hbm [resolvable:$true] %s28
      %s30 = sshll.u32 [#allocation3], 4
      %s31 = int_to_ptr.vmem [resolvable:$true] %s30
      %36 = dma.hbm_to_vmem [thread:$0]  %s29, 2560, %s31, [#allocation4], 128, 128, 8
    $region9: #{lenet1_forward.1} parent=1 // pred_fallthru
      _
    // Predicated region
    $region10: #{lenet1_forward.1} parent=1 // pred_check
      _
    $region11: #{lenet1_forward.1} parent=1 // pred_check_branch
      %38 = sbr.rel (0) target = $region13
    $region12: #{lenet1_forward.1} parent=1 // pred_region
      _
    $region13: #{lenet1_forward.1} parent=1 // pred_fallthru
      _
    // Predicated region
    $region14: #{lenet1_forward.1} parent=1 // pred_check
      _
    $region15: #{lenet1_forward.1} parent=1 // pred_check_branch
      %40 = sbr.rel (0) target = $region17
    $region16: #{lenet1_forward.1} parent=1 // pred_region
      _
    $region17: #{lenet1_forward.1} parent=1 // pred_fallthru
      _
    // Predicated region
    $region18: #{lenet1_forward.1} parent=1 // pred_check
      _
    $region19: #{lenet1_forward.1} parent=1 // pred_check_branch
      %42 = sbr.rel (0) target = $region21
    $region20: #{lenet1_forward.1} parent=1 // pred_region
      _
    $region21: #{lenet1_forward.1} parent=1 // pred_fallthru
      _
    // Predicated region
    $region22: #{lenet1_forward.1} parent=1 // pred_check
      _
    $region23: #{lenet1_forward.1} parent=1 // pred_check_branch
      %44 = sbr.rel (0) target = $region25
    $region24: #{lenet1_forward.1} parent=1 // pred_region
      %46 = vsyncadd [#allocation7], 0
      %s47 = sshll.u32 %s5, 4
      %s48 = int_to_ptr.hbm [resolvable:$true] %s47
      %s49 = sshll.u32 [#allocation6], 4
      %s50 = int_to_ptr.vmem [resolvable:$true] %s49
      %55 = dma.hbm_to_vmem [thread:$0]  %s48, 2304, %s50, [#allocation7], 128, 128, 8
    $region25: #{lenet1_forward.1} parent=1 // pred_fallthru
      _
    // Predicated region
    $region26: #{lenet1_forward.1} parent=1 // pred_check
      _
    $region27: #{lenet1_forward.1} parent=1 // pred_check_branch
      %57 = sbr.rel (0) target = $region29
    $region28: #{lenet1_forward.1} parent=1 // pred_region
      _
    $region29: #{lenet1_forward.1} parent=1 // pred_fallthru
      _
    // Predicated region
    $region30: #{lenet1_forward.1} parent=1 // pred_check
      _
    $region31: #{lenet1_forward.1} parent=1 // pred_check_branch
      %59 = sbr.rel (0) target = $region33
    $region32: #{lenet1_forward.1} parent=1 // pred_region
      _
    $region33: #{lenet1_forward.1} parent=1 // pred_fallthru
      _
    // Predicated region
    $region34: #{lenet1_forward.1} parent=1 // pred_check
      _
    $region35: #{lenet1_forward.1} parent=1 // pred_check_branch
      %61 = sbr.rel (0) target = $region37
    $region36: #{lenet1_forward.1} parent=1 // pred_region
      _
    $region37: #{lenet1_forward.1} parent=1 // pred_fallthru
      _
    // Predicated region
    $region38: #{lenet1_forward.1} parent=1 // pred_check
      _
    $region39: #{lenet1_forward.1} parent=1 // pred_check_branch
      %63 = sbr.rel (0) target = $region41
    $region40: #{lenet1_forward.1} parent=1 // pred_region
      %65 = vsyncadd [#allocation7], 0
      %s66 = sshll.u32 %s9, 4
      %s67 = int_to_ptr.hbm [resolvable:$true] %s66
      %s68 = sshll.u32 [#allocation8], 4
      %s69 = int_to_ptr.vmem [resolvable:$true] %s68
      %74 = dma.hbm_to_vmem [thread:$0]  %s67, 2048, %s69, [#allocation7], 128, 128, 8
    $region41: #{lenet1_forward.1} parent=1 // pred_fallthru
      _
    // Predicated region
    $region42: #{lenet1_forward.1} parent=1 // pred_check
      _
    $region43: #{lenet1_forward.1} parent=1 // pred_check_branch
      %76 = sbr.rel (0) target = $region45
    $region44: #{lenet1_forward.1} parent=1 // pred_region
      _
    $region45: #{lenet1_forward.1} parent=1 // pred_fallthru
      _
    // Predicated region
    $region46: #{lenet1_forward.1} parent=1 // pred_check
      _
    $region47: #{lenet1_forward.1} parent=1 // pred_check_branch
      %78 = sbr.rel (0) target = $region49
    $region48: #{lenet1_forward.1} parent=1 // pred_region
      %80 = vsyncadd [#allocation10], 0
      %s81 = sshll.u32 %s11, 4
      %s82 = int_to_ptr.hbm [resolvable:$true] %s81
      %s83 = sshll.u32 [#allocation9], 4
      %s84 = int_to_ptr.vmem [resolvable:$true] %s83
      %89 = dma.hbm_to_vmem [thread:$0]  %s82, 2048, %s84, [#allocation10], 128, 128, 8
    $region49: #{lenet1_forward.1} parent=1 // pred_fallthru
      _
    // Predicated region
    $region50: #{lenet1_forward.1} parent=1 // pred_check
      _
    $region51: #{lenet1_forward.1} parent=1 // pred_check_branch
      %91 = sbr.rel (0) target = $region53
    $region52: #{lenet1_forward.1} parent=1 // pred_region
      _
    $region53: #{lenet1_forward.1} parent=1 // pred_fallthru
      _
    // Predicated region
    $region54: #{lenet1_forward.1} parent=1 // pred_check
      _
    $region55: #{lenet1_forward.1} parent=1 // pred_check_branch
      %93 = sbr.rel (0) target = $region57
    $region56: #{lenet1_forward.1} parent=1 // pred_region
      %95 = dma.done [#allocation4], 2560
    $region57: #{lenet1_forward.1} parent=1 // pred_fallthru
      _
    // Predicated region
    $region58: #{lenet1_forward.1} parent=1 // pred_check
      _
    $region59: #{lenet1_forward.1} parent=1 // pred_check_branch
      %97 = sbr.rel (0) target = $region61
    $region60: #{lenet1_forward.1} parent=1 // pred_region
      %99 = dma.done [#allocation7], 2304
    $region61: #{lenet1_forward.1} parent=1 // pred_fallthru
      _
    // Predicated region
    $region62: #{lenet1_forward.1} parent=1 // pred_check
      _
    $region63: #{lenet1_forward.1} parent=1 // pred_check_branch
      %101 = sbr.rel (0) target = $region65
    $region64: #{lenet1_forward.1} parent=1 // pred_region
      %103 = dma.done [#allocation7], 2048
    $region65: #{lenet1_forward.1} parent=1 // pred_fallthru
      _
    // Predicated region
    $region66: #{lenet1_forward.1} parent=1 // pred_check
      _
    $region67: #{lenet1_forward.1} parent=1 // pred_check_branch
      %105 = sbr.rel (0) target = $region69
    $region68: #{lenet1_forward.1} parent=1 // pred_region
      %107 = dma.done [#allocation10], 2048
    $region69: #{lenet1_forward.1} parent=1 // pred_fallthru
      _
    %v109 = vld [vmem:[%s0] sm:$0xf]
    %v110 = vld [vmem:[%s0 + $0x4] sm:$0xf]
    %v111 = vld [vmem:[%s0 + $0x8] sm:$0xf]
    %v112 = vld [vmem:[%s0 + $0xc] sm:$0xf]
    %v113 = vld [vmem:[%s0 + $0x10] sm:$0xf]
    %v114 = vld [vmem:[%s0 + $0x14] sm:$0xf]
    %v115 = vld [vmem:[%s0 + $0x18] sm:$0xf]
    %v116 = vld [vmem:[%s0 + $0x1c] sm:$0xf]
    %v117 = vld [vmem:[#allocation3] sm:$0xff]
    %v118 = vld [vmem:[#allocation3 + $0x8] sm:$0xff]
    %v119 = vld [vmem:[#allocation3 + $0x10] sm:$0xff]
    %v120 = vld [vmem:[#allocation3 + $0x18] sm:$0x33]
    %s121 = scalar_lea.vmem [#allocation3], 32
    %v122 = vld [vmem:[%s121] sm:$0xff]
    %v123 = vld [vmem:[%s121 + $0x8] sm:$0xff]
    %v124 = vld [vmem:[%s121 + $0x10] sm:$0xff]
    %v125 = vld [vmem:[%s121 + $0x18] sm:$0x33]
    %v134 = vunpack.c.l.b16 %v109
    %v135 = vunpack.c.l.b16 %v110
    %v136 = vunpack.c.l.b16 %v111
    %v137 = vunpack.c.l.b16 %v112
    %v138 = vunpack.c.l.b16 %v113
    %v139 = vunpack.c.l.b16 %v114
    %v140 = vunpack.c.l.b16 %v115
    %v141 = vunpack.c.l.b16 %v116
    %v142 = vpack.c.b16 %v135, %v134
    %v143 = vpack.c.b16 %v137, %v136
    %v144 = vpack.c.b16 %v139, %v138
    %v145 = vpack.c.b16 %v141, %v140
    %vm146 = vsmask.f32 7424
    %v148 = vshrl.u32 %v142, 16
    %v150 = vshll.u32 %v142, 16
    %v152 = vrot.slane %v150, 1
    %v153 = vor.u32 %v148, %v152
    %v155 = vshll.u32 %v143, 16
    %v157 = vrot.slane %v155, 1
    %v158 = vsel %vm146, %v153, %v157
    %v159 = vshrl.u32 %v143, 16
    %v161 = vor.u32 %v159, %v157
    %v163 = vshll.u32 %v144, 16
    %v165 = vrot.slane %v163, 1
    %v166 = vsel %vm146, %v161, %v165
    %v167 = vshrl.u32 %v144, 16
    %v169 = vor.u32 %v167, %v165
    %v171 = vshll.u32 %v145, 16
    %v173 = vrot.slane %v171, 1
    %v174 = vsel %vm146, %v169, %v173
    %v175 = vshrl.u32 %v145, 16
    %v177 = vor.u32 %v175, %v173
    %v182 = vunpack.c.l.b16 %v122
    %v183 = vunpack.c.h.b16 %v122
    %v184 = vunpack.c.l.b16 %v123
    %v185 = vunpack.c.h.b16 %v123
    %v186 = vunpack.c.l.b16 %v124
    %v187 = vunpack.c.h.b16 %v124
    %v188 = vunpack.c.l.b16 %v125
    %v189 = vunpack.c.h.b16 %v125
    %v190 = vpack.c.b16 %v184, %v182
    %v191 = vpack.c.b16 %v185, %v183
    %v192 = vpack.c.b16 %v188, %v186
    %v193 = vpack.c.b16 %v189, %v187
    %vm196 = vcmask 228352
    %v198 = vsel %vm196, %v158, 0
    %v201 = vsel %vm196, %v166, 0
    %v204 = vsel %vm196, %v174, 0
    %v207 = vsel %vm196, %v177, 0
    %vm209 = vcmask 1045504
    %v211 = vsel %vm209, %v192, 0
    %v214 = vsel %vm209, %v193, 0
    %216 = vmatpush.bf16.msra.mxu0 0
    %217 = vmatpush.bf16.msra.mxu0 0
    %218 = vmatpush.bf16.msra.mxu0 0
    %219 = vmatpush.bf16.msra.mxu0 0
    %220 = vmatpush.bf16.msra.mxu0 0
    %221 = vmatpush.bf16.msra.mxu0 0
    %222 = vmatpush.bf16.msra.mxu0 %v211
    %223 = vmatpush.bf16.msra.mxu0 %v190
    %224 = vmatmul.bf16.gmra.mxu0 %v198
    %v225 = vpop.f32.mrf.mxu0
    %v226 = vadd.f32 0.0, %v225
    %v227 = vpop.f32.mrf.mxu0
    %v228 = vadd.f32 0.0, %v227
    %229 = vmatmul.bf16.gmra.mxu0 %v201
    %v230 = vpop.f32.mrf.mxu0
    %v231 = vadd.f32 0.0, %v230
    %v232 = vpop.f32.mrf.mxu0
    %v233 = vadd.f32 0.0, %v232
    %234 = vmatmul.bf16.gmra.mxu0 %v204
    %v235 = vpop.f32.mrf.mxu0
    %v236 = vadd.f32 0.0, %v235
    %v237 = vpop.f32.mrf.mxu0
    %v238 = vadd.f32 0.0, %v237
    %239 = vmatmul.bf16.gmra.mxu0 %v207
    %v240 = vpop.f32.mrf.mxu0
    %v241 = vadd.f32 0.0, %v240
    %v242 = vpop.f32.mrf.mxu0
    %v243 = vadd.f32 0.0, %v242
    %244 = vdwg.mxu0
    %245 = vmatpush.bf16.msra.mxu0 0
    %246 = vmatpush.bf16.msra.mxu0 0
    %247 = vmatpush.bf16.msra.mxu0 0
    %248 = vmatpush.bf16.msra.mxu0 0
    %249 = vmatpush.bf16.msra.mxu0 0
    %250 = vmatpush.bf16.msra.mxu0 0
    %251 = vmatpush.bf16.msra.mxu0 %v214
    %252 = vmatpush.bf16.msra.mxu0 %v191
    %253 = vmatmul.bf16.gmra.mxu0 %v198
    %v254 = vpop.f32.mrf.mxu0
    %v255 = vadd.f32 0.0, %v254
    %v256 = vpop.f32.mrf.mxu0
    %v257 = vadd.f32 0.0, %v256
    %258 = vmatmul.bf16.gmra.mxu0 %v201
    %v259 = vpop.f32.mrf.mxu0
    %v260 = vadd.f32 0.0, %v259
    %v261 = vpop.f32.mrf.mxu0
    %v262 = vadd.f32 0.0, %v261
    %263 = vmatmul.bf16.gmra.mxu0 %v204
    %v264 = vpop.f32.mrf.mxu0
    %v265 = vadd.f32 0.0, %v264
    %v266 = vpop.f32.mrf.mxu0
    %v267 = vadd.f32 0.0, %v266
    %268 = vmatmul.bf16.gmra.mxu0 %v207
    %v269 = vpop.f32.mrf.mxu0
    %v270 = vadd.f32 0.0, %v269
    %v271 = vpop.f32.mrf.mxu0
    %v272 = vadd.f32 0.0, %v271
    %273 = vdwg.mxu0
    %v278 = vunpack.c.l.b16 %v117
    %v279 = vunpack.c.h.b16 %v117
    %v280 = vunpack.c.l.b16 %v118
    %v281 = vunpack.c.h.b16 %v118
    %v282 = vunpack.c.l.b16 %v119
    %v283 = vunpack.c.h.b16 %v119
    %v284 = vunpack.c.l.b16 %v120
    %v285 = vunpack.c.h.b16 %v120
    %v286 = vpack.c.b16 %v280, %v278
    %v287 = vpack.c.b16 %v281, %v279
    %v288 = vpack.c.b16 %v284, %v282
    %v289 = vpack.c.b16 %v285, %v283
    %v292 = vsel %vm196, %v142, 0
    %v294 = vsel %vm196, %v143, 0
    %v296 = vsel %vm196, %v144, 0
    %v298 = vsel %vm196, %v145, 0
    %v301 = vsel %vm209, %v288, 0
    %v304 = vsel %vm209, %v289, 0
    %306 = vmatpush.bf16.msra.mxu0 0
    %307 = vmatpush.bf16.msra.mxu0 0
    %308 = vmatpush.bf16.msra.mxu0 0
    %309 = vmatpush.bf16.msra.mxu0 0
    %310 = vmatpush.bf16.msra.mxu0 0
    %311 = vmatpush.bf16.msra.mxu0 0
    %312 = vmatpush.bf16.msra.mxu0 %v301
    %313 = vmatpush.bf16.msra.mxu0 %v286
    %314 = vmatmul.bf16.gmra.mxu0 %v292
    %v315 = vpop.f32.mrf.mxu0
    %v316 = vadd.f32 %v226, %v315
    %v317 = vpop.f32.mrf.mxu0
    %v318 = vadd.f32 %v228, %v317
    %319 = vmatmul.bf16.gmra.mxu0 %v294
    %v320 = vpop.f32.mrf.mxu0
    %v321 = vadd.f32 %v231, %v320
    %v322 = vpop.f32.mrf.mxu0
    %v323 = vadd.f32 %v233, %v322
    %324 = vmatmul.bf16.gmra.mxu0 %v296
    %v325 = vpop.f32.mrf.mxu0
    %v326 = vadd.f32 %v236, %v325
    %v327 = vpop.f32.mrf.mxu0
    %v328 = vadd.f32 %v238, %v327
    %329 = vmatmul.bf16.gmra.mxu0 %v298
    %v330 = vpop.f32.mrf.mxu0
    %v331 = vadd.f32 %v241, %v330
    %v332 = vpop.f32.mrf.mxu0
    %v333 = vadd.f32 %v243, %v332
    %334 = vdwg.mxu0
    %335 = vmatpush.bf16.msra.mxu0 0
    %336 = vmatpush.bf16.msra.mxu0 0
    %337 = vmatpush.bf16.msra.mxu0 0
    %338 = vmatpush.bf16.msra.mxu0 0
    %339 = vmatpush.bf16.msra.mxu0 0
    %340 = vmatpush.bf16.msra.mxu0 0
    %341 = vmatpush.bf16.msra.mxu0 %v304
    %342 = vmatpush.bf16.msra.mxu0 %v287
    %343 = vmatmul.bf16.gmra.mxu0 %v292
    %v344 = vpop.f32.mrf.mxu0
    %v345 = vadd.f32 %v255, %v344
    %v346 = vpop.f32.mrf.mxu0
    %v347 = vadd.f32 %v257, %v346
    %348 = vmatmul.bf16.gmra.mxu0 %v294
    %v349 = vpop.f32.mrf.mxu0
    %v350 = vadd.f32 %v260, %v349
    %v351 = vpop.f32.mrf.mxu0
    %v352 = vadd.f32 %v262, %v351
    %353 = vmatmul.bf16.gmra.mxu0 %v296
    %v354 = vpop.f32.mrf.mxu0
    %v355 = vadd.f32 %v265, %v354
    %v356 = vpop.f32.mrf.mxu0
    %v357 = vadd.f32 %v267, %v356
    %358 = vmatmul.bf16.gmra.mxu0 %v298
    %v359 = vpop.f32.mrf.mxu0
    %v360 = vadd.f32 %v270, %v359
    %v361 = vpop.f32.mrf.mxu0
    %v362 = vadd.f32 %v272, %v361
    %363 = vdwg.mxu0
    %s364 = scalar_lea.vmem [#allocation3], 64
    %v365 = vld [vmem:[%s364] sm:$0xff]
    %v366 = vld [vmem:[%s364 + $0x8] sm:$0xff]
    %v367 = vld [vmem:[%s364 + $0x10] sm:$0xff]
    %v368 = vld [vmem:[%s364 + $0x18] sm:$0x33]
    %vm369 = vcmask 1046528
    %v370 = vrot.slane %v142, 1
    %v371 = vrot.slane %v143, 1
    %v372 = vsel %vm369, %v370, %v371
    %v373 = vrot.slane %v144, 1
    %v374 = vsel %vm369, %v371, %v373
    %v375 = vrot.slane %v145, 1
    %v376 = vsel %vm369, %v373, %v375
    %v381 = vunpack.c.l.b16 %v365
    %v382 = vunpack.c.h.b16 %v365
    %v383 = vunpack.c.l.b16 %v366
    %v384 = vunpack.c.h.b16 %v366
    %v385 = vunpack.c.l.b16 %v367
    %v386 = vunpack.c.h.b16 %v367
    %v387 = vunpack.c.l.b16 %v368
    %v388 = vunpack.c.h.b16 %v368
    %v389 = vpack.c.b16 %v383, %v381
    %v390 = vpack.c.b16 %v384, %v382
    %v391 = vpack.c.b16 %v387, %v385
    %v392 = vpack.c.b16 %v388, %v386
    %v396 = vsel %vm196, %v372, 0
    %v399 = vsel %vm196, %v374, 0
    %v402 = vsel %vm196, %v376, 0
    %v405 = vsel %vm196, %v375, 0
    %v408 = vsel %vm209, %v391, 0
    %v411 = vsel %vm209, %v392, 0
    %413 = vmatpush.bf16.msra.mxu0 0
    %414 = vmatpush.bf16.msra.mxu0 0
    %415 = vmatpush.bf16.msra.mxu0 0
    %416 = vmatpush.bf16.msra.mxu0 0
    %417 = vmatpush.bf16.msra.mxu0 0
    %418 = vmatpush.bf16.msra.mxu0 0
    %419 = vmatpush.bf16.msra.mxu0 %v408
    %420 = vmatpush.bf16.msra.mxu0 %v389
    %421 = vmatmul.bf16.gmra.mxu0 %v396
    %v422 = vpop.f32.mrf.mxu0
    %v423 = vadd.f32 0.0, %v422
    %v424 = vpop.f32.mrf.mxu0
    %v425 = vadd.f32 0.0, %v424
    %426 = vmatmul.bf16.gmra.mxu0 %v399
    %v427 = vpop.f32.mrf.mxu0
    %v428 = vadd.f32 0.0, %v427
    %v429 = vpop.f32.mrf.mxu0
    %v430 = vadd.f32 0.0, %v429
    %431 = vmatmul.bf16.gmra.mxu0 %v402
    %v432 = vpop.f32.mrf.mxu0
    %v433 = vadd.f32 0.0, %v432
    %v434 = vpop.f32.mrf.mxu0
    %v435 = vadd.f32 0.0, %v434
    %436 = vmatmul.bf16.gmra.mxu0 %v405
    %v437 = vpop.f32.mrf.mxu0
    %v438 = vadd.f32 0.0, %v437
    %v439 = vpop.f32.mrf.mxu0
    %v440 = vadd.f32 0.0, %v439
    %441 = vdwg.mxu0
    %442 = vmatpush.bf16.msra.mxu0 0
    %443 = vmatpush.bf16.msra.mxu0 0
    %444 = vmatpush.bf16.msra.mxu0 0
    %445 = vmatpush.bf16.msra.mxu0 0
    %446 = vmatpush.bf16.msra.mxu0 0
    %447 = vmatpush.bf16.msra.mxu0 0
    %448 = vmatpush.bf16.msra.mxu0 %v411
    %449 = vmatpush.bf16.msra.mxu0 %v390
    %450 = vmatmul.bf16.gmra.mxu0 %v396
    %v451 = vpop.f32.mrf.mxu0
    %v452 = vadd.f32 0.0, %v451
    %v453 = vpop.f32.mrf.mxu0
    %v454 = vadd.f32 0.0, %v453
    %455 = vmatmul.bf16.gmra.mxu0 %v399
    %v456 = vpop.f32.mrf.mxu0
    %v457 = vadd.f32 0.0, %v456
    %v458 = vpop.f32.mrf.mxu0
    %v459 = vadd.f32 0.0, %v458
    %460 = vmatmul.bf16.gmra.mxu0 %v402
    %v461 = vpop.f32.mrf.mxu0
    %v462 = vadd.f32 0.0, %v461
    %v463 = vpop.f32.mrf.mxu0
    %v464 = vadd.f32 0.0, %v463
    %465 = vmatmul.bf16.gmra.mxu0 %v405
    %v466 = vpop.f32.mrf.mxu0
    %v467 = vadd.f32 0.0, %v466
    %v468 = vpop.f32.mrf.mxu0
    %v469 = vadd.f32 0.0, %v468
    %470 = vdwg.mxu0
    %v471 = vadd.f32 %v316, %v423
    %v472 = vadd.f32 %v345, %v452
    %v473 = vadd.f32 %v318, %v425
    %v474 = vadd.f32 %v347, %v454
    %v475 = vadd.f32 %v321, %v428
    %v476 = vadd.f32 %v350, %v457
    %v477 = vadd.f32 %v323, %v430
    %v478 = vadd.f32 %v352, %v459
    %v479 = vadd.f32 %v326, %v433
    %v480 = vadd.f32 %v355, %v462
    %v481 = vadd.f32 %v328, %v435
    %v482 = vadd.f32 %v357, %v464
    %v483 = vadd.f32 %v331, %v438
    %v484 = vadd.f32 %v360, %v467
    %v485 = vadd.f32 %v333, %v440
    %v486 = vadd.f32 %v362, %v469
    %s487 = scalar_lea.vmem [#allocation3], 96
    %v488 = vld [vmem:[%s487] sm:$0xff]
    %v489 = vld [vmem:[%s487 + $0x8] sm:$0xff]
    %v490 = vld [vmem:[%s487 + $0x10] sm:$0xff]
    %v491 = vld [vmem:[%s487 + $0x18] sm:$0x33]
    %vm492 = vsmask.f32 6400
    %v493 = vrot.slane %v148, 1
    %v494 = vrot.slane %v150, 2
    %v495 = vor.u32 %v493, %v494
    %v496 = vrot.slane %v159, 1
    %v497 = vrot.slane %v155, 2
    %v498 = vor.u32 %v496, %v497
    %v499 = vsel %vm492, %v495, %v498
    %v500 = vrot.slane %v167, 1
    %v501 = vrot.slane %v163, 2
    %v502 = vor.u32 %v500, %v501
    %v503 = vsel %vm492, %v498, %v502
    %v504 = vrot.slane %v175, 1
    %v505 = vrot.slane %v171, 2
    %v506 = vor.u32 %v504, %v505
    %v507 = vsel %vm492, %v502, %v506
    %v512 = vunpack.c.l.b16 %v488
    %v513 = vunpack.c.h.b16 %v488
    %v514 = vunpack.c.l.b16 %v489
    %v515 = vunpack.c.h.b16 %v489
    %v516 = vunpack.c.l.b16 %v490
    %v517 = vunpack.c.h.b16 %v490
    %v518 = vunpack.c.l.b16 %v491
    %v519 = vunpack.c.h.b16 %v491
    %v520 = vpack.c.b16 %v514, %v512
    %v521 = vpack.c.b16 %v515, %v513
    %v522 = vpack.c.b16 %v518, %v516
    %v523 = vpack.c.b16 %v519, %v517
    %v527 = vsel %vm196, %v499, 0
    %v530 = vsel %vm196, %v503, 0
    %v533 = vsel %vm196, %v507, 0
    %v536 = vsel %vm196, %v506, 0
    %v539 = vsel %vm209, %v522, 0
    %v542 = vsel %vm209, %v523, 0
    %544 = vmatpush.bf16.msra.mxu0 0
    %545 = vmatpush.bf16.msra.mxu0 0
    %546 = vmatpush.bf16.msra.mxu0 0
    %547 = vmatpush.bf16.msra.mxu0 0
    %548 = vmatpush.bf16.msra.mxu0 0
    %549 = vmatpush.bf16.msra.mxu0 0
    %550 = vmatpush.bf16.msra.mxu0 %v539
    %551 = vmatpush.bf16.msra.mxu0 %v520
    %552 = vmatmul.bf16.gmra.mxu0 %v527
    %v553 = vpop.f32.mrf.mxu0
    %v554 = vadd.f32 0.0, %v553
    %v555 = vpop.f32.mrf.mxu0
    %v556 = vadd.f32 0.0, %v555
    %557 = vmatmul.bf16.gmra.mxu0 %v530
    %v558 = vpop.f32.mrf.mxu0
    %v559 = vadd.f32 0.0, %v558
    %v560 = vpop.f32.mrf.mxu0
    %v561 = vadd.f32 0.0, %v560
    %562 = vmatmul.bf16.gmra.mxu0 %v533
    %v563 = vpop.f32.mrf.mxu0
    %v564 = vadd.f32 0.0, %v563
    %v565 = vpop.f32.mrf.mxu0
    %v566 = vadd.f32 0.0, %v565
    %567 = vmatmul.bf16.gmra.mxu0 %v536
    %v568 = vpop.f32.mrf.mxu0
    %v569 = vadd.f32 0.0, %v568
    %v570 = vpop.f32.mrf.mxu0
    %v571 = vadd.f32 0.0, %v570
    %572 = vdwg.mxu0
    %573 = vmatpush.bf16.msra.mxu0 0
    %574 = vmatpush.bf16.msra.mxu0 0
    %575 = vmatpush.bf16.msra.mxu0 0
    %576 = vmatpush.bf16.msra.mxu0 0
    %577 = vmatpush.bf16.msra.mxu0 0
    %578 = vmatpush.bf16.msra.mxu0 0
    %579 = vmatpush.bf16.msra.mxu0 %v542
    %580 = vmatpush.bf16.msra.mxu0 %v521
    %581 = vmatmul.bf16.gmra.mxu0 %v527
    %v582 = vpop.f32.mrf.mxu0
    %v583 = vadd.f32 0.0, %v582
    %v584 = vpop.f32.mrf.mxu0
    %v585 = vadd.f32 0.0, %v584
    %586 = vmatmul.bf16.gmra.mxu0 %v530
    %v587 = vpop.f32.mrf.mxu0
    %v588 = vadd.f32 0.0, %v587
    %v589 = vpop.f32.mrf.mxu0
    %v590 = vadd.f32 0.0, %v589
    %591 = vmatmul.bf16.gmra.mxu0 %v533
    %v592 = vpop.f32.mrf.mxu0
    %v593 = vadd.f32 0.0, %v592
    %v594 = vpop.f32.mrf.mxu0
    %v595 = vadd.f32 0.0, %v594
    %596 = vmatmul.bf16.gmra.mxu0 %v536
    %v597 = vpop.f32.mrf.mxu0
    %v598 = vadd.f32 0.0, %v597
    %v599 = vpop.f32.mrf.mxu0
    %v600 = vadd.f32 0.0, %v599
    %601 = vdwg.mxu0
    %v602 = vadd.f32 %v471, %v554
    %v603 = vadd.f32 %v472, %v583
    %v604 = vadd.f32 %v473, %v556
    %v605 = vadd.f32 %v474, %v585
    %v606 = vadd.f32 %v475, %v559
    %v607 = vadd.f32 %v476, %v588
    %v608 = vadd.f32 %v477, %v561
    %v609 = vadd.f32 %v478, %v590
    %v610 = vadd.f32 %v479, %v564
    %v611 = vadd.f32 %v480, %v593
    %v612 = vadd.f32 %v481, %v566
    %v613 = vadd.f32 %v482, %v595
    %v614 = vadd.f32 %v483, %v569
    %v615 = vadd.f32 %v484, %v598
    %v616 = vadd.f32 %v485, %v571
    %v617 = vadd.f32 %v486, %v600
    %s618 = scalar_lea.vmem [#allocation3], 128
    %v619 = vld [vmem:[%s618] sm:$0xff]
    %v620 = vld [vmem:[%s618 + $0x8] sm:$0xff]
    %v621 = vld [vmem:[%s618 + $0x10] sm:$0xff]
    %v622 = vld [vmem:[%s618 + $0x18] sm:$0x33]
    %vm623 = vcmask 1045504
    %v624 = vrot.slane %v142, 2
    %v625 = vrot.slane %v143, 2
    %v626 = vsel %vm623, %v624, %v625
    %v627 = vrot.slane %v144, 2
    %v628 = vsel %vm623, %v625, %v627
    %v629 = vrot.slane %v145, 2
    %v630 = vsel %vm623, %v627, %v629
    %v635 = vunpack.c.l.b16 %v619
    %v636 = vunpack.c.h.b16 %v619
    %v637 = vunpack.c.l.b16 %v620
    %v638 = vunpack.c.h.b16 %v620
    %v639 = vunpack.c.l.b16 %v621
    %v640 = vunpack.c.h.b16 %v621
    %v641 = vunpack.c.l.b16 %v622
    %v642 = vunpack.c.h.b16 %v622
    %v643 = vpack.c.b16 %v637, %v635
    %v644 = vpack.c.b16 %v638, %v636
    %v645 = vpack.c.b16 %v641, %v639
    %v646 = vpack.c.b16 %v642, %v640
    %v650 = vsel %vm196, %v626, 0
    %v653 = vsel %vm196, %v628, 0
    %v656 = vsel %vm196, %v630, 0
    %v659 = vsel %vm196, %v629, 0
    %v662 = vsel %vm209, %v645, 0
    %v665 = vsel %vm209, %v646, 0
    %667 = vmatpush.bf16.msra.mxu0 0
    %668 = vmatpush.bf16.msra.mxu0 0
    %669 = vmatpush.bf16.msra.mxu0 0
    %670 = vmatpush.bf16.msra.mxu0 0
    %671 = vmatpush.bf16.msra.mxu0 0
    %672 = vmatpush.bf16.msra.mxu0 0
    %673 = vmatpush.bf16.msra.mxu0 %v662
    %674 = vmatpush.bf16.msra.mxu0 %v643
    %675 = vmatmul.bf16.gmra.mxu0 %v650
    %v676 = vpop.f32.mrf.mxu0
    %v677 = vadd.f32 0.0, %v676
    %v678 = vpop.f32.mrf.mxu0
    %v679 = vadd.f32 0.0, %v678
    %680 = vmatmul.bf16.gmra.mxu0 %v653
    %v681 = vpop.f32.mrf.mxu0
    %v682 = vadd.f32 0.0, %v681
    %v683 = vpop.f32.mrf.mxu0
    %v684 = vadd.f32 0.0, %v683
    %685 = vmatmul.bf16.gmra.mxu0 %v656
    %v686 = vpop.f32.mrf.mxu0
    %v687 = vadd.f32 0.0, %v686
    %v688 = vpop.f32.mrf.mxu0
    %v689 = vadd.f32 0.0, %v688
    %690 = vmatmul.bf16.gmra.mxu0 %v659
    %v691 = vpop.f32.mrf.mxu0
    %v692 = vadd.f32 0.0, %v691
    %v693 = vpop.f32.mrf.mxu0
    %v694 = vadd.f32 0.0, %v693
    %695 = vdwg.mxu0
    %696 = vmatpush.bf16.msra.mxu0 0
    %697 = vmatpush.bf16.msra.mxu0 0
    %698 = vmatpush.bf16.msra.mxu0 0
    %699 = vmatpush.bf16.msra.mxu0 0
    %700 = vmatpush.bf16.msra.mxu0 0
    %701 = vmatpush.bf16.msra.mxu0 0
    %702 = vmatpush.bf16.msra.mxu0 %v665
    %703 = vmatpush.bf16.msra.mxu0 %v644
    %704 = vmatmul.bf16.gmra.mxu0 %v650
    %v705 = vpop.f32.mrf.mxu0
    %v706 = vadd.f32 0.0, %v705
    %v707 = vpop.f32.mrf.mxu0
    %v708 = vadd.f32 0.0, %v707
    %709 = vmatmul.bf16.gmra.mxu0 %v653
    %v710 = vpop.f32.mrf.mxu0
    %v711 = vadd.f32 0.0, %v710
    %v712 = vpop.f32.mrf.mxu0
    %v713 = vadd.f32 0.0, %v712
    %714 = vmatmul.bf16.gmra.mxu0 %v656
    %v715 = vpop.f32.mrf.mxu0
    %v716 = vadd.f32 0.0, %v715
    %v717 = vpop.f32.mrf.mxu0
    %v718 = vadd.f32 0.0, %v717
    %719 = vmatmul.bf16.gmra.mxu0 %v659
    %v720 = vpop.f32.mrf.mxu0
    %v721 = vadd.f32 0.0, %v720
    %v722 = vpop.f32.mrf.mxu0
    %v723 = vadd.f32 0.0, %v722
    %724 = vdwg.mxu0
    %v725 = vadd.f32 %v602, %v677
    %v726 = vadd.f32 %v603, %v706
    %v727 = vadd.f32 %v604, %v679
    %v728 = vadd.f32 %v605, %v708
    %v729 = vadd.f32 %v606, %v682
    %v730 = vadd.f32 %v607, %v711
    %v731 = vadd.f32 %v608, %v684
    %v732 = vadd.f32 %v609, %v713
    %v733 = vadd.f32 %v610, %v687
    %v734 = vadd.f32 %v611, %v716
    %v735 = vadd.f32 %v612, %v689
    %v736 = vadd.f32 %v613, %v718
    %v737 = vadd.f32 %v614, %v692
    %v738 = vadd.f32 %v615, %v721
    %v739 = vadd.f32 %v616, %v694
    %v740 = vadd.f32 %v617, %v723
    %v741 = vld [vmem:[%s2] sm:$0x3]
    %v743 = vperm.slane %v741, 0
    %v744 = vperm.slane %v741, 1
    %v747 = vadd.f32 %v725, %v743
    %v748 = vadd.f32 %v726, %v744
    %v749 = vadd.f32 %v727, %v743
    %v750 = vadd.f32 %v728, %v744
    %v751 = vadd.f32 %v729, %v743
    %v752 = vadd.f32 %v730, %v744
    %v753 = vadd.f32 %v731, %v743
    %v754 = vadd.f32 %v732, %v744
    %v755 = vadd.f32 %v733, %v743
    %v756 = vadd.f32 %v734, %v744
    %v757 = vadd.f32 %v735, %v743
    %v758 = vadd.f32 %v736, %v744
    %v759 = vadd.f32 %v737, %v743
    %v760 = vadd.f32 %v738, %v744
    %v761 = vadd.f32 %v739, %v743
    %v762 = vadd.f32 %v740, %v744
    %v763 = vtanh.pop %v747
    %v764 = vtanh.pop %v748
    %v765 = vtanh.pop %v749
    %v766 = vtanh.pop %v750
    %v767 = vtanh.pop %v751
    %v768 = vtanh.pop %v752
    %v769 = vtanh.pop %v753
    %v770 = vtanh.pop %v754
    %v771 = vtanh.pop %v755
    %v772 = vtanh.pop %v756
    %v773 = vtanh.pop %v757
    %v774 = vtanh.pop %v758
    %v775 = vtanh.pop %v759
    %v776 = vtanh.pop %v760
    %v777 = vtanh.pop %v761
    %v778 = vtanh.pop %v762
    %v779 = vld [vmem:[#allocation6] sm:$0xff]
    %v780 = vld [vmem:[#allocation6 + $0x8] sm:$0xff]
    %v781 = vld [vmem:[#allocation6 + $0x10] sm:$0xff]
    %v782 = vld [vmem:[#allocation6 + $0x18] sm:$0xff]
    %v783 = vld [vmem:[#allocation6 + $0x20] sm:$0xff]
    %v784 = vld [vmem:[#allocation6 + $0x28] sm:$0xff]
    %v785 = vld [vmem:[#allocation6 + $0x30] sm:$0xff]
    %v786 = vld [vmem:[#allocation6 + $0x38] sm:$0xff]
    %v787 = vld [vmem:[#allocation6 + $0x40] sm:$0xff]
    %v788 = vld [vmem:[#allocation6 + $0x48] sm:$0xff]
    %v789 = vld [vmem:[#allocation6 + $0x50] sm:$0xff]
    %v790 = vld [vmem:[#allocation6 + $0x58] sm:$0xff]
    %v791 = vld [vmem:[#allocation6 + $0x60] sm:$0xff]
    %v792 = vld [vmem:[#allocation6 + $0x68] sm:$0xff]
    %v793 = vld [vmem:[#allocation6 + $0x70] sm:$0xff]
    %v794 = vld [vmem:[#allocation6 + $0x78] sm:$0xff]
    %v795 = vld [vmem:[#allocation6 + $0x80] sm:$0xff]
    %v796 = vld [vmem:[#allocation6 + $0x88] sm:$0x3]
    %vm813 = vcmask 1046528
    %v814 = vrot.slane %v763, 1
    %v815 = vrot.slane %v765, 1
    %v816 = vsel %vm813, %v814, %v815
    %v817 = vrot.slane %v764, 1
    %v818 = vrot.slane %v766, 1
    %v819 = vsel %vm813, %v817, %v818
    %v820 = vrot.slane %v767, 1
    %v821 = vsel %vm813, %v815, %v820
    %v822 = vrot.slane %v768, 1
    %v823 = vsel %vm813, %v818, %v822
    %v824 = vrot.slane %v769, 1
    %v825 = vsel %vm813, %v820, %v824
    %v826 = vrot.slane %v770, 1
    %v827 = vsel %vm813, %v822, %v826
    %v828 = vrot.slane %v771, 1
    %v829 = vsel %vm813, %v824, %v828
    %v830 = vrot.slane %v772, 1
    %v831 = vsel %vm813, %v826, %v830
    %v832 = vrot.slane %v773, 1
    %v833 = vsel %vm813, %v828, %v832
    %v834 = vrot.slane %v774, 1
    %v835 = vsel %vm813, %v830, %v834
    %v836 = vrot.slane %v775, 1
    %v837 = vsel %vm813, %v832, %v836
    %v838 = vrot.slane %v776, 1
    %v839 = vsel %vm813, %v834, %v838
    %v840 = vrot.slane %v777, 1
    %v841 = vsel %vm813, %v836, %v840
    %v842 = vrot.slane %v778, 1
    %v843 = vsel %vm813, %v838, %v842
    %v860 = vmax.f32 %v763, %v816
    %v861 = vmax.f32 %v764, %v819
    %v862 = vmax.f32 %v765, %v821
    %v863 = vmax.f32 %v766, %v823
    %v864 = vmax.f32 %v767, %v825
    %v865 = vmax.f32 %v768, %v827
    %v866 = vmax.f32 %v769, %v829
    %v867 = vmax.f32 %v770, %v831
    %v868 = vmax.f32 %v771, %v833
    %v869 = vmax.f32 %v772, %v835
    %v870 = vmax.f32 %v773, %v837
    %v871 = vmax.f32 %v774, %v839
    %v872 = vmax.f32 %v775, %v841
    %v873 = vmax.f32 %v776, %v843
    %v874 = vmax.f32 %v777, %v840
    %v875 = vmax.f32 %v778, %v842
    %892 = vrot.lane.b32.xlu0 %v860, 122
    %v893 = vpop.permute.xlu0 %892
    %894 = vrot.lane.b32.xlu0 %v861, 122
    %v895 = vpop.permute.xlu0 %894
    %896 = vrot.lane.b32.xlu0 %v862, 122
    %v897 = vpop.permute.xlu0 %896
    %898 = vrot.lane.b32.xlu0 %v863, 122
    %v899 = vpop.permute.xlu0 %898
    %900 = vrot.lane.b32.xlu0 %v864, 122
    %v901 = vpop.permute.xlu0 %900
    %902 = vrot.lane.b32.xlu0 %v865, 122
    %v903 = vpop.permute.xlu0 %902
    %904 = vrot.lane.b32.xlu0 %v866, 122
    %v905 = vpop.permute.xlu0 %904
    %906 = vrot.lane.b32.xlu0 %v867, 122
    %v907 = vpop.permute.xlu0 %906
    %908 = vrot.lane.b32.xlu0 %v868, 122
    %v909 = vpop.permute.xlu0 %908
    %910 = vrot.lane.b32.xlu0 %v869, 122
    %v911 = vpop.permute.xlu0 %910
    %912 = vrot.lane.b32.xlu0 %v870, 122
    %v913 = vpop.permute.xlu0 %912
    %914 = vrot.lane.b32.xlu0 %v871, 122
    %v915 = vpop.permute.xlu0 %914
    %916 = vrot.lane.b32.xlu0 %v872, 122
    %v917 = vpop.permute.xlu0 %916
    %918 = vrot.lane.b32.xlu0 %v873, 122
    %v919 = vpop.permute.xlu0 %918
    %920 = vrot.lane.b32.xlu0 %v874, 122
    %v921 = vpop.permute.xlu0 %920
    %922 = vrot.lane.b32.xlu0 %v875, 122
    %v923 = vpop.permute.xlu0 %922
    %vm924 = vcmask 998400
    %v925 = vsel %vm924, %v893, %v895
    %v926 = vsel %vm924, %v897, %v899
    %v927 = vsel %vm924, %v901, %v903
    %v928 = vsel %vm924, %v905, %v907
    %v929 = vsel %vm924, %v909, %v911
    %v930 = vsel %vm924, %v913, %v915
    %v931 = vsel %vm924, %v917, %v919
    %v932 = vsel %vm924, %v921, %v923
    %v949 = vmax.f32 %v860, %v925
    %v950 = vmax.f32 %v861, %v895
    %v951 = vmax.f32 %v862, %v926
    %v952 = vmax.f32 %v863, %v899
    %v953 = vmax.f32 %v864, %v927
    %v954 = vmax.f32 %v865, %v903
    %v955 = vmax.f32 %v866, %v928
    %v956 = vmax.f32 %v867, %v907
    %v957 = vmax.f32 %v868, %v929
    %v958 = vmax.f32 %v869, %v911
    %v959 = vmax.f32 %v870, %v930
    %v960 = vmax.f32 %v871, %v915
    %v961 = vmax.f32 %v872, %v931
    %v962 = vmax.f32 %v873, %v919
    %v963 = vmax.f32 %v874, %v932
    %v964 = vmax.f32 %v875, %v923
    %vm965 = vcmask 80896
    %v967 = vsel %vm965, %v950, 0
    %v970 = vsel %vm965, %v952, 0
    %v973 = vsel %vm965, %v954, 0
    %v976 = vsel %vm965, %v956, 0
    %v979 = vsel %vm965, %v958, 0
    %v982 = vsel %vm965, %v960, 0
    %v985 = vsel %vm965, %v962, 0
    %v988 = vsel %vm965, %v964, 0
    %vm990 = vcmask 1041408
    %v992 = vsel %vm990, %v796, 0
    %994 = vmatpush.msra.mxu0 %v794
    %995 = vmatpush.msra.mxu0 %v793
    %996 = vmatpush.msra.mxu0 %v792
    %997 = vmatpush.msra.mxu0 %v791
    %998 = vmatpush.msra.mxu0 %v790
    %999 = vmatpush.msra.mxu0 %v789
    %1000 = vmatpush.msra.mxu0 %v788
    %1001 = vmatpush.msra.mxu0 %v787
    %1002 = vmatpush.msra.mxu0 %v786
    %1003 = vmatpush.msra.mxu0 %v785
    %1004 = vmatpush.msra.mxu0 %v784
    %1005 = vmatpush.msra.mxu0 %v783
    %1006 = vmatpush.msra.mxu0 %v782
    %1007 = vmatpush.msra.mxu0 %v781
    %1008 = vmatpush.msra.mxu0 %v780
    %1009 = vmatpush.msra.mxu0 %v779
    %1010 = vmatmul.f32.gmra.mxu0 %v949
    %v1011 = vpop.f32.mrf.mxu0
    %v1012 = vadd.f32 0.0, %v1011
    %1013 = vmatmul.f32.gmra.mxu0 %v951
    %v1014 = vpop.f32.mrf.mxu0
    %v1015 = vadd.f32 0.0, %v1014
    %1016 = vmatmul.f32.gmra.mxu0 %v953
    %v1017 = vpop.f32.mrf.mxu0
    %v1018 = vadd.f32 0.0, %v1017
    %1019 = vmatmul.f32.gmra.mxu0 %v955
    %v1020 = vpop.f32.mrf.mxu0
    %v1021 = vadd.f32 0.0, %v1020
    %1022 = vmatmul.f32.gmra.mxu0 %v957
    %v1023 = vpop.f32.mrf.mxu0
    %v1024 = vadd.f32 0.0, %v1023
    %1025 = vmatmul.f32.gmra.mxu0 %v959
    %v1026 = vpop.f32.mrf.mxu0
    %v1027 = vadd.f32 0.0, %v1026
    %1028 = vmatmul.f32.gmra.mxu0 %v961
    %v1029 = vpop.f32.mrf.mxu0
    %v1030 = vadd.f32 0.0, %v1029
    %1031 = vmatmul.f32.gmra.mxu0 %v963
    %v1032 = vpop.f32.mrf.mxu0
    %v1033 = vadd.f32 0.0, %v1032
    %1034 = vdwg.mxu0
    %1035 = vmatpush.msra.mxu0 0.0
    %1036 = vmatpush.msra.mxu0 0.0
    %1037 = vmatpush.msra.mxu0 0.0
    %1038 = vmatpush.msra.mxu0 0.0
    %1039 = vmatpush.msra.mxu0 0.0
    %1040 = vmatpush.msra.mxu0 0.0
    %1041 = vmatpush.msra.mxu0 0.0
    %1042 = vmatpush.msra.mxu0 0.0
    %1043 = vmatpush.msra.mxu0 0.0
    %1044 = vmatpush.msra.mxu0 0.0
    %1045 = vmatpush.msra.mxu0 0.0
    %1046 = vmatpush.msra.mxu0 0.0
    %1047 = vmatpush.msra.mxu0 0.0
    %1048 = vmatpush.msra.mxu0 0.0
    %1049 = vmatpush.msra.mxu0 %v992
    %1050 = vmatpush.msra.mxu0 %v795
    %1051 = vmatmul.f32.gmra.mxu0 %v967
    %v1052 = vpop.f32.mrf.mxu0
    %v1053 = vadd.f32 %v1012, %v1052
    %1054 = vmatmul.f32.gmra.mxu0 %v970
    %v1055 = vpop.f32.mrf.mxu0
    %v1056 = vadd.f32 %v1015, %v1055
    %1057 = vmatmul.f32.gmra.mxu0 %v973
    %v1058 = vpop.f32.mrf.mxu0
    %v1059 = vadd.f32 %v1018, %v1058
    %1060 = vmatmul.f32.gmra.mxu0 %v976
    %v1061 = vpop.f32.mrf.mxu0
    %v1062 = vadd.f32 %v1021, %v1061
    %1063 = vmatmul.f32.gmra.mxu0 %v979
    %v1064 = vpop.f32.mrf.mxu0
    %v1065 = vadd.f32 %v1024, %v1064
    %1066 = vmatmul.f32.gmra.mxu0 %v982
    %v1067 = vpop.f32.mrf.mxu0
    %v1068 = vadd.f32 %v1027, %v1067
    %1069 = vmatmul.f32.gmra.mxu0 %v985
    %v1070 = vpop.f32.mrf.mxu0
    %v1071 = vadd.f32 %v1030, %v1070
    %1072 = vmatmul.f32.gmra.mxu0 %v988
    %v1073 = vpop.f32.mrf.mxu0
    %v1074 = vadd.f32 %v1033, %v1073
    %1075 = vdwg.mxu0
    %v1076 = vpack.c.bf16 %v1053, %v1053
    %v1077 = vpack.c.bf16 %v1056, %v1056
    %v1078 = vpack.c.bf16 %v1059, %v1059
    %v1079 = vpack.c.bf16 %v1062, %v1062
    %v1080 = vpack.c.bf16 %v1065, %v1065
    %v1081 = vpack.c.bf16 %v1068, %v1068
    %v1082 = vpack.c.bf16 %v1071, %v1071
    %v1083 = vpack.c.bf16 %v1074, %v1074
    %v1084 = vld [vmem:[%s3] sm:$0xf]
    %v1085 = vld [vmem:[%s3 + $0x4] sm:$0xf]
    %v1086 = vld [vmem:[%s3 + $0x8] sm:$0xf]
    %v1087 = vld [vmem:[%s3 + $0xc] sm:$0xf]
    %v1088 = vld [vmem:[%s3 + $0x10] sm:$0xf]
    %v1089 = vld [vmem:[%s3 + $0x14] sm:$0xf]
    %v1090 = vld [vmem:[%s3 + $0x18] sm:$0xf]
    %v1091 = vld [vmem:[%s3 + $0x1c] sm:$0xf]
    %v1092 = vld [vmem:[%s3 + $0x20] sm:$0xf]
    %s1093 = scalar_lea.vmem %s3, 36
    %v1094 = vld [vmem:[%s1093] sm:$0xf]
    %v1095 = vld [vmem:[%s1093 + $0x4] sm:$0xf]
    %v1096 = vld [vmem:[%s1093 + $0x8] sm:$0xf]
    %v1097 = vld [vmem:[%s1093 + $0xc] sm:$0xf]
    %v1098 = vld [vmem:[%s1093 + $0x10] sm:$0xf]
    %v1099 = vld [vmem:[%s1093 + $0x14] sm:$0xf]
    %v1100 = vld [vmem:[%s1093 + $0x18] sm:$0xf]
    %v1101 = vld [vmem:[%s1093 + $0x1c] sm:$0xf]
    %v1102 = vld [vmem:[%s1093 + $0x20] sm:$0xf]
    %v1110 = vunpack.c.l.b16 %v1076
    %v1111 = vunpack.c.l.b16 %v1077
    %v1112 = vunpack.c.l.b16 %v1078
    %v1113 = vunpack.c.l.b16 %v1079
    %v1114 = vunpack.c.l.b16 %v1080
    %v1115 = vunpack.c.l.b16 %v1081
    %v1116 = vunpack.c.l.b16 %v1082
    %v1117 = vpack.c.b16 %v1111, %v1110
    %v1118 = vpack.c.b16 %v1113, %v1112
    %v1119 = vpack.c.b16 %v1115, %v1114
    %v1120 = vpack.c.b16 %v1116, %v1116
    %v1121 = vrot.slane %v1117, 1
    %v1122 = vrot.slane %v1118, 1
    %v1123 = vsel %vm369, %v1121, %v1122
    %v1124 = vrot.slane %v1119, 1
    %v1125 = vsel %vm369, %v1122, %v1124
    %v1126 = vrot.slane %v1120, 1
    %v1127 = vsel %vm369, %v1124, %v1126
    %v1137 = vunpack.c.l.b16 %v1094
    %v1138 = vunpack.c.l.b16 %v1095
    %v1139 = vunpack.c.l.b16 %v1096
    %v1140 = vunpack.c.l.b16 %v1097
    %v1141 = vunpack.c.l.b16 %v1098
    %v1142 = vunpack.c.l.b16 %v1099
    %v1143 = vunpack.c.l.b16 %v1100
    %v1144 = vunpack.c.l.b16 %v1101
    %v1145 = vunpack.c.l.b16 %v1102
    %v1146 = vpack.c.b16 %v1138, %v1137
    %v1147 = vpack.c.b16 %v1140, %v1139
    %v1148 = vpack.c.b16 %v1142, %v1141
    %v1149 = vpack.c.b16 %v1144, %v1143
    %v1150 = vpack.c.b16 %v1145, %v1145
    %vm1155 = vcmask 588800
    %v1157 = vsel %vm1155, %v1123, 0
    %v1160 = vsel %vm1155, %v1125, 0
    %v1163 = vsel %vm1155, %v1127, 0
    %v1166 = vsel %vm1155, %v1126, 0
    %vm1168 = vcmask 1043456
    %v1170 = vsel %vm1168, %v1150, 0
    %1172 = vmatpush.bf16.msra.mxu0 0
    %1173 = vmatpush.bf16.msra.mxu0 0
    %1174 = vmatpush.bf16.msra.mxu0 0
    %1175 = vmatpush.bf16.msra.mxu0 %v1170
    %1176 = vmatpush.bf16.msra.mxu0 %v1149
    %1177 = vmatpush.bf16.msra.mxu0 %v1148
    %1178 = vmatpush.bf16.msra.mxu0 %v1147
    %1179 = vmatpush.bf16.msra.mxu0 %v1146
    %1180 = vmatmul.bf16.gmra.mxu0 %v1157
    %v1181 = vpop.f32.mrf.mxu0
    %v1182 = vadd.f32 0.0, %v1181
    %v1183 = vpop.f32.mrf.mxu0
    %v1184 = vadd.f32 0.0, %v1183
    %1185 = vmatmul.bf16.gmra.mxu0 %v1160
    %v1186 = vpop.f32.mrf.mxu0
    %v1187 = vadd.f32 0.0, %v1186
    %v1188 = vpop.f32.mrf.mxu0
    %v1189 = vadd.f32 0.0, %v1188
    %1190 = vmatmul.bf16.gmra.mxu0 %v1163
    %v1191 = vpop.f32.mrf.mxu0
    %v1192 = vadd.f32 0.0, %v1191
    %v1193 = vpop.f32.mrf.mxu0
    %v1194 = vadd.f32 0.0, %v1193
    %1195 = vmatmul.bf16.gmra.mxu0 %v1166
    %v1196 = vpop.f32.mrf.mxu0
    %v1197 = vadd.f32 0.0, %v1196
    %v1198 = vpop.f32.mrf.mxu0
    %1199 = vdwg.mxu0
    %v1209 = vunpack.c.l.b16 %v1084
    %v1210 = vunpack.c.l.b16 %v1085
    %v1211 = vunpack.c.l.b16 %v1086
    %v1212 = vunpack.c.l.b16 %v1087
    %v1213 = vunpack.c.l.b16 %v1088
    %v1214 = vunpack.c.l.b16 %v1089
    %v1215 = vunpack.c.l.b16 %v1090
    %v1216 = vunpack.c.l.b16 %v1091
    %v1217 = vunpack.c.l.b16 %v1092
    %v1218 = vpack.c.b16 %v1210, %v1209
    %v1219 = vpack.c.b16 %v1212, %v1211
    %v1220 = vpack.c.b16 %v1214, %v1213
    %v1221 = vpack.c.b16 %v1216, %v1215
    %v1222 = vpack.c.b16 %v1217, %v1217
    %v1228 = vsel %vm1155, %v1117, 0
    %v1231 = vsel %vm1155, %v1118, 0
    %v1234 = vsel %vm1155, %v1119, 0
    %v1237 = vsel %vm1155, %v1120, 0
    %v1240 = vsel %vm1168, %v1222, 0
    %1242 = vmatpush.bf16.msra.mxu0 0
    %1243 = vmatpush.bf16.msra.mxu0 0
    %1244 = vmatpush.bf16.msra.mxu0 0
    %1245 = vmatpush.bf16.msra.mxu0 %v1240
    %1246 = vmatpush.bf16.msra.mxu0 %v1221
    %1247 = vmatpush.bf16.msra.mxu0 %v1220
    %1248 = vmatpush.bf16.msra.mxu0 %v1219
    %1249 = vmatpush.bf16.msra.mxu0 %v1218
    %1250 = vmatmul.bf16.gmra.mxu0 %v1228
    %v1251 = vpop.f32.mrf.mxu0
    %v1252 = vadd.f32 %v1182, %v1251
    %v1253 = vpop.f32.mrf.mxu0
    %v1254 = vadd.f32 %v1184, %v1253
    %1255 = vmatmul.bf16.gmra.mxu0 %v1231
    %v1256 = vpop.f32.mrf.mxu0
    %v1257 = vadd.f32 %v1187, %v1256
    %v1258 = vpop.f32.mrf.mxu0
    %v1259 = vadd.f32 %v1189, %v1258
    %1260 = vmatmul.bf16.gmra.mxu0 %v1234
    %v1261 = vpop.f32.mrf.mxu0
    %v1262 = vadd.f32 %v1192, %v1261
    %v1263 = vpop.f32.mrf.mxu0
    %v1264 = vadd.f32 %v1194, %v1263
    %1265 = vmatmul.bf16.gmra.mxu0 %v1237
    %v1266 = vpop.f32.mrf.mxu0
    %v1267 = vadd.f32 %v1197, %v1266
    %v1268 = vpop.f32.mrf.mxu0
    %1269 = vdwg.mxu0
    %s1270 = scalar_lea.vmem %s3, 72
    %v1271 = vld [vmem:[%s1270] sm:$0xf]
    %v1272 = vld [vmem:[%s1270 + $0x4] sm:$0xf]
    %v1273 = vld [vmem:[%s1270 + $0x8] sm:$0xf]
    %v1274 = vld [vmem:[%s1270 + $0xc] sm:$0xf]
    %v1275 = vld [vmem:[%s1270 + $0x10] sm:$0xf]
    %v1276 = vld [vmem:[%s1270 + $0x14] sm:$0xf]
    %v1277 = vld [vmem:[%s1270 + $0x18] sm:$0xf]
    %v1278 = vld [vmem:[%s1270 + $0x1c] sm:$0xf]
    %v1279 = vld [vmem:[%s1270 + $0x20] sm:$0xf]
    %v1280 = vrot.slane %v1117, 2
    %v1281 = vrot.slane %v1118, 2
    %v1282 = vsel %vm623, %v1280, %v1281
    %v1283 = vrot.slane %v1119, 2
    %v1284 = vsel %vm623, %v1281, %v1283
    %v1285 = vrot.slane %v1120, 2
    %v1286 = vsel %vm623, %v1283, %v1285
    %v1296 = vunpack.c.l.b16 %v1271
    %v1297 = vunpack.c.l.b16 %v1272
    %v1298 = vunpack.c.l.b16 %v1273
    %v1299 = vunpack.c.l.b16 %v1274
    %v1300 = vunpack.c.l.b16 %v1275
    %v1301 = vunpack.c.l.b16 %v1276
    %v1302 = vunpack.c.l.b16 %v1277
    %v1303 = vunpack.c.l.b16 %v1278
    %v1304 = vunpack.c.l.b16 %v1279
    %v1305 = vpack.c.b16 %v1297, %v1296
    %v1306 = vpack.c.b16 %v1299, %v1298
    %v1307 = vpack.c.b16 %v1301, %v1300
    %v1308 = vpack.c.b16 %v1303, %v1302
    %v1309 = vpack.c.b16 %v1304, %v1304
    %v1315 = vsel %vm1155, %v1282, 0
    %v1318 = vsel %vm1155, %v1284, 0
    %v1321 = vsel %vm1155, %v1286, 0
    %v1324 = vsel %vm1155, %v1285, 0
    %v1327 = vsel %vm1168, %v1309, 0
    %1329 = vmatpush.bf16.msra.mxu0 0
    %1330 = vmatpush.bf16.msra.mxu0 0
    %1331 = vmatpush.bf16.msra.mxu0 0
    %1332 = vmatpush.bf16.msra.mxu0 %v1327
    %1333 = vmatpush.bf16.msra.mxu0 %v1308
    %1334 = vmatpush.bf16.msra.mxu0 %v1307
    %1335 = vmatpush.bf16.msra.mxu0 %v1306
    %1336 = vmatpush.bf16.msra.mxu0 %v1305
    %1337 = vmatmul.bf16.gmra.mxu0 %v1315
    %v1338 = vpop.f32.mrf.mxu0
    %v1339 = vadd.f32 0.0, %v1338
    %v1340 = vpop.f32.mrf.mxu0
    %v1341 = vadd.f32 0.0, %v1340
    %1342 = vmatmul.bf16.gmra.mxu0 %v1318
    %v1343 = vpop.f32.mrf.mxu0
    %v1344 = vadd.f32 0.0, %v1343
    %v1345 = vpop.f32.mrf.mxu0
    %v1346 = vadd.f32 0.0, %v1345
    %1347 = vmatmul.bf16.gmra.mxu0 %v1321
    %v1348 = vpop.f32.mrf.mxu0
    %v1349 = vadd.f32 0.0, %v1348
    %v1350 = vpop.f32.mrf.mxu0
    %v1351 = vadd.f32 0.0, %v1350
    %1352 = vmatmul.bf16.gmra.mxu0 %v1324
    %v1353 = vpop.f32.mrf.mxu0
    %v1354 = vadd.f32 0.0, %v1353
    %v1355 = vpop.f32.mrf.mxu0
    %1356 = vdwg.mxu0
    %v1357 = vadd.f32 %v1252, %v1339
    %v1358 = vadd.f32 %v1254, %v1341
    %v1359 = vadd.f32 %v1257, %v1344
    %v1360 = vadd.f32 %v1259, %v1346
    %v1361 = vadd.f32 %v1262, %v1349
    %v1362 = vadd.f32 %v1264, %v1351
    %v1363 = vadd.f32 %v1267, %v1354
    %s1364 = scalar_lea.vmem %s3, 108
    %v1365 = vld [vmem:[%s1364] sm:$0xf]
    %v1366 = vld [vmem:[%s1364 + $0x4] sm:$0xf]
    %v1367 = vld [vmem:[%s1364 + $0x8] sm:$0xf]
    %v1368 = vld [vmem:[%s1364 + $0xc] sm:$0xf]
    %v1369 = vld [vmem:[%s1364 + $0x10] sm:$0xf]
    %v1370 = vld [vmem:[%s1364 + $0x14] sm:$0xf]
    %v1371 = vld [vmem:[%s1364 + $0x18] sm:$0xf]
    %v1372 = vld [vmem:[%s1364 + $0x1c] sm:$0xf]
    %v1373 = vld [vmem:[%s1364 + $0x20] sm:$0xf]
    %v1375 = vunpack.c.l.b16 %v1083
    %v1376 = vpack.c.b16 %v1375, %v1116
    %vm1377 = vcmask 1044480
    %v1378 = vrot.slane %v1117, 3
    %v1379 = vrot.slane %v1118, 3
    %v1380 = vsel %vm1377, %v1378, %v1379
    %v1381 = vrot.slane %v1119, 3
    %v1382 = vsel %vm1377, %v1379, %v1381
    %v1383 = vrot.slane %v1376, 3
    %v1384 = vsel %vm1377, %v1381, %v1383
    %v1394 = vunpack.c.l.b16 %v1365
    %v1395 = vunpack.c.l.b16 %v1366
    %v1396 = vunpack.c.l.b16 %v1367
    %v1397 = vunpack.c.l.b16 %v1368
    %v1398 = vunpack.c.l.b16 %v1369
    %v1399 = vunpack.c.l.b16 %v1370
    %v1400 = vunpack.c.l.b16 %v1371
    %v1401 = vunpack.c.l.b16 %v1372
    %v1402 = vunpack.c.l.b16 %v1373
    %v1403 = vpack.c.b16 %v1395, %v1394
    %v1404 = vpack.c.b16 %v1397, %v1396
    %v1405 = vpack.c.b16 %v1399, %v1398
    %v1406 = vpack.c.b16 %v1401, %v1400
    %v1407 = vpack.c.b16 %v1402, %v1402
    %v1413 = vsel %vm1155, %v1380, 0
    %v1416 = vsel %vm1155, %v1382, 0
    %v1419 = vsel %vm1155, %v1384, 0
    %v1422 = vsel %vm1155, %v1383, 0
    %v1425 = vsel %vm1168, %v1407, 0
    %1427 = vmatpush.bf16.msra.mxu0 0
    %1428 = vmatpush.bf16.msra.mxu0 0
    %1429 = vmatpush.bf16.msra.mxu0 0
    %1430 = vmatpush.bf16.msra.mxu0 %v1425
    %1431 = vmatpush.bf16.msra.mxu0 %v1406
    %1432 = vmatpush.bf16.msra.mxu0 %v1405
    %1433 = vmatpush.bf16.msra.mxu0 %v1404
    %1434 = vmatpush.bf16.msra.mxu0 %v1403
    %1435 = vmatmul.bf16.gmra.mxu0 %v1413
    %v1436 = vpop.f32.mrf.mxu0
    %v1437 = vadd.f32 0.0, %v1436
    %v1438 = vpop.f32.mrf.mxu0
    %v1439 = vadd.f32 0.0, %v1438
    %1440 = vmatmul.bf16.gmra.mxu0 %v1416
    %v1441 = vpop.f32.mrf.mxu0
    %v1442 = vadd.f32 0.0, %v1441
    %v1443 = vpop.f32.mrf.mxu0
    %v1444 = vadd.f32 0.0, %v1443
    %1445 = vmatmul.bf16.gmra.mxu0 %v1419
    %v1446 = vpop.f32.mrf.mxu0
    %v1447 = vadd.f32 0.0, %v1446
    %v1448 = vpop.f32.mrf.mxu0
    %v1449 = vadd.f32 0.0, %v1448
    %1450 = vmatmul.bf16.gmra.mxu0 %v1422
    %v1451 = vpop.f32.mrf.mxu0
    %v1452 = vadd.f32 0.0, %v1451
    %v1453 = vpop.f32.mrf.mxu0
    %1454 = vdwg.mxu0
    %v1455 = vadd.f32 %v1357, %v1437
    %v1456 = vadd.f32 %v1358, %v1439
    %v1457 = vadd.f32 %v1359, %v1442
    %v1458 = vadd.f32 %v1360, %v1444
    %v1459 = vadd.f32 %v1361, %v1447
    %v1460 = vadd.f32 %v1362, %v1449
    %v1461 = vadd.f32 %v1363, %v1452
    %s1462 = scalar_lea.vmem %s3, 144
    %v1463 = vld [vmem:[%s1462] sm:$0xf]
    %v1464 = vld [vmem:[%s1462 + $0x4] sm:$0xf]
    %v1465 = vld [vmem:[%s1462 + $0x8] sm:$0xf]
    %v1466 = vld [vmem:[%s1462 + $0xc] sm:$0xf]
    %v1467 = vld [vmem:[%s1462 + $0x10] sm:$0xf]
    %v1468 = vld [vmem:[%s1462 + $0x14] sm:$0xf]
    %v1469 = vld [vmem:[%s1462 + $0x18] sm:$0xf]
    %v1470 = vld [vmem:[%s1462 + $0x1c] sm:$0xf]
    %v1471 = vld [vmem:[%s1462 + $0x20] sm:$0xf]
    %v1472 = vpack.c.b16 %v1112, %v1111
    %v1473 = vpack.c.b16 %v1114, %v1113
    %v1474 = vpack.c.b16 %v1116, %v1115
    %v1475 = vpack.c.b16 %v1375, %v1375
    %v1485 = vunpack.c.l.b16 %v1463
    %v1486 = vunpack.c.l.b16 %v1464
    %v1487 = vunpack.c.l.b16 %v1465
    %v1488 = vunpack.c.l.b16 %v1466
    %v1489 = vunpack.c.l.b16 %v1467
    %v1490 = vunpack.c.l.b16 %v1468
    %v1491 = vunpack.c.l.b16 %v1469
    %v1492 = vunpack.c.l.b16 %v1470
    %v1493 = vunpack.c.l.b16 %v1471
    %v1494 = vpack.c.b16 %v1486, %v1485
    %v1495 = vpack.c.b16 %v1488, %v1487
    %v1496 = vpack.c.b16 %v1490, %v1489
    %v1497 = vpack.c.b16 %v1492, %v1491
    %v1498 = vpack.c.b16 %v1493, %v1493
    %v1504 = vsel %vm1155, %v1472, 0
    %v1507 = vsel %vm1155, %v1473, 0
    %v1510 = vsel %vm1155, %v1474, 0
    %v1513 = vsel %vm1155, %v1475, 0
    %v1516 = vsel %vm1168, %v1498, 0
    %1518 = vmatpush.bf16.msra.mxu0 0
    %1519 = vmatpush.bf16.msra.mxu0 0
    %1520 = vmatpush.bf16.msra.mxu0 0
    %1521 = vmatpush.bf16.msra.mxu0 %v1516
    %1522 = vmatpush.bf16.msra.mxu0 %v1497
    %1523 = vmatpush.bf16.msra.mxu0 %v1496
    %1524 = vmatpush.bf16.msra.mxu0 %v1495
    %1525 = vmatpush.bf16.msra.mxu0 %v1494
    %1526 = vmatmul.bf16.gmra.mxu0 %v1504
    %v1527 = vpop.f32.mrf.mxu0
    %v1528 = vadd.f32 0.0, %v1527
    %v1529 = vpop.f32.mrf.mxu0
    %v1530 = vadd.f32 0.0, %v1529
    %1531 = vmatmul.bf16.gmra.mxu0 %v1507
    %v1532 = vpop.f32.mrf.mxu0
    %v1533 = vadd.f32 0.0, %v1532
    %v1534 = vpop.f32.mrf.mxu0
    %v1535 = vadd.f32 0.0, %v1534
    %1536 = vmatmul.bf16.gmra.mxu0 %v1510
    %v1537 = vpop.f32.mrf.mxu0
    %v1538 = vadd.f32 0.0, %v1537
    %v1539 = vpop.f32.mrf.mxu0
    %v1540 = vadd.f32 0.0, %v1539
    %1541 = vmatmul.bf16.gmra.mxu0 %v1513
    %v1542 = vpop.f32.mrf.mxu0
    %v1543 = vadd.f32 0.0, %v1542
    %v1544 = vpop.f32.mrf.mxu0
    %1545 = vdwg.mxu0
    %v1546 = vadd.f32 %v1455, %v1528
    %v1547 = vadd.f32 %v1456, %v1530
    %v1548 = vadd.f32 %v1457, %v1533
    %v1549 = vadd.f32 %v1458, %v1535
    %v1550 = vadd.f32 %v1459, %v1538
    %v1551 = vadd.f32 %v1460, %v1540
    %v1552 = vadd.f32 %v1461, %v1543
    %v1553 = vld [vmem:[%s4] sm:$0x1]
    %v1555 = vperm.slane %v1553, 0
    %v1557 = vadd.f32 %v1546, %v1555
    %v1558 = vadd.f32 %v1547, %v1555
    %v1559 = vadd.f32 %v1548, %v1555
    %v1560 = vadd.f32 %v1549, %v1555
    %v1561 = vadd.f32 %v1550, %v1555
    %v1562 = vadd.f32 %v1551, %v1555
    %v1563 = vadd.f32 %v1552, %v1555
    %v1564 = vtanh.pop %v1557
    %v1565 = vtanh.pop %v1558
    %v1566 = vtanh.pop %v1559
    %v1567 = vtanh.pop %v1560
    %v1568 = vtanh.pop %v1561
    %v1569 = vtanh.pop %v1562
    %v1570 = vtanh.pop %v1563
    %v1571 = vld [vmem:[%s6] sm:$0xff]
    %v1572 = vld [vmem:[%s6 + $0x8] sm:$0xff]
    %v1573 = vld [vmem:[%s6 + $0x10] sm:$0xff]
    %v1574 = vld [vmem:[%s6 + $0x18] sm:$0xff]
    %v1575 = vld [vmem:[%s6 + $0x20] sm:$0xff]
    %v1576 = vld [vmem:[%s6 + $0x28] sm:$0xff]
    %v1577 = vld [vmem:[%s6 + $0x30] sm:$0xff]
    %v1578 = vld [vmem:[%s6 + $0x38] sm:$0xff]
    %v1579 = vld [vmem:[%s6 + $0x40] sm:$0xff]
    %v1580 = vld [vmem:[%s6 + $0x48] sm:$0xff]
    %v1581 = vld [vmem:[%s6 + $0x50] sm:$0xff]
    %v1582 = vld [vmem:[%s6 + $0x58] sm:$0xff]
    %v1583 = vld [vmem:[%s6 + $0x60] sm:$0xff]
    %v1584 = vld [vmem:[%s6 + $0x68] sm:$0xff]
    %v1592 = vrot.slane %v1564, 2
    %v1593 = vrot.slane %v1565, 2
    %v1594 = vsel %vm209, %v1592, %v1593
    %v1595 = vrot.slane %v1566, 2
    %v1596 = vsel %vm209, %v1593, %v1595
    %v1597 = vrot.slane %v1567, 2
    %v1598 = vsel %vm209, %v1595, %v1597
    %v1599 = vrot.slane %v1568, 2
    %v1600 = vsel %vm209, %v1597, %v1599
    %v1601 = vrot.slane %v1569, 2
    %v1602 = vsel %vm209, %v1599, %v1601
    %v1603 = vrot.slane %v1570, 2
    %v1604 = vsel %vm209, %v1601, %v1603
    %v1612 = vmax.f32 %v1564, %v1594
    %v1613 = vmax.f32 %v1565, %v1596
    %v1614 = vmax.f32 %v1566, %v1598
    %v1615 = vmax.f32 %v1567, %v1600
    %v1616 = vmax.f32 %v1568, %v1602
    %v1617 = vmax.f32 %v1569, %v1604
    %v1618 = vmax.f32 %v1570, %v1603
    %1626 = vrot.lane.b32.xlu0 %v1612, 112
    %v1627 = vpop.permute.xlu0 %1626
    %1628 = vrot.lane.b32.xlu0 %v1613, 112
    %v1629 = vpop.permute.xlu0 %1628
    %1630 = vrot.lane.b32.xlu0 %v1614, 112
    %v1631 = vpop.permute.xlu0 %1630
    %1632 = vrot.lane.b32.xlu0 %v1615, 112
    %v1633 = vpop.permute.xlu0 %1632
    %1634 = vrot.lane.b32.xlu0 %v1616, 112
    %v1635 = vpop.permute.xlu0 %1634
    %1636 = vrot.lane.b32.xlu0 %v1617, 112
    %v1637 = vpop.permute.xlu0 %1636
    %1638 = vrot.lane.b32.xlu0 %v1618, 112
    %v1639 = vpop.permute.xlu0 %1638
    %v1647 = vmax.f32 %v1612, %v1627
    %v1648 = vmax.f32 %v1613, %v1629
    %v1649 = vmax.f32 %v1614, %v1631
    %v1650 = vmax.f32 %v1615, %v1633
    %v1651 = vmax.f32 %v1616, %v1635
    %v1652 = vmax.f32 %v1617, %v1637
    %v1653 = vmax.f32 %v1618, %v1639
    %vm1654 = vcmask 916480
    %v1656 = vsel %vm1654, %v1647, 0
    %v1659 = vsel %vm1654, %v1648, 0
    %v1662 = vsel %vm1654, %v1649, 0
    %v1665 = vsel %vm1654, %v1650, 0
    %v1668 = vsel %vm1654, %v1651, 0
    %v1671 = vsel %vm1654, %v1652, 0
    %v1674 = vsel %vm1654, %v1653, 0
    %1676 = vmatpush.msra.mxu0 0.0
    %1677 = vmatpush.msra.mxu0 0.0
    %1678 = vmatpush.msra.mxu0 %v1584
    %1679 = vmatpush.msra.mxu0 %v1583
    %1680 = vmatpush.msra.mxu0 %v1582
    %1681 = vmatpush.msra.mxu0 %v1581
    %1682 = vmatpush.msra.mxu0 %v1580
    %1683 = vmatpush.msra.mxu0 %v1579
    %1684 = vmatpush.msra.mxu0 %v1578
    %1685 = vmatpush.msra.mxu0 %v1577
    %1686 = vmatpush.msra.mxu0 %v1576
    %1687 = vmatpush.msra.mxu0 %v1575
    %1688 = vmatpush.msra.mxu0 %v1574
    %1689 = vmatpush.msra.mxu0 %v1573
    %1690 = vmatpush.msra.mxu0 %v1572
    %1691 = vmatpush.msra.mxu0 %v1571
    %1692 = vmatmul.f32.gmra.mxu0 %v1656
    %v1693 = vpop.f32.mrf.mxu0
    %v1694 = vadd.f32 0.0, %v1693
    %1695 = vmatmul.f32.gmra.mxu0 %v1659
    %v1696 = vpop.f32.mrf.mxu0
    %v1697 = vadd.f32 0.0, %v1696
    %1698 = vmatmul.f32.gmra.mxu0 %v1662
    %v1699 = vpop.f32.mrf.mxu0
    %v1700 = vadd.f32 0.0, %v1699
    %1701 = vmatmul.f32.gmra.mxu0 %v1665
    %v1702 = vpop.f32.mrf.mxu0
    %v1703 = vadd.f32 0.0, %v1702
    %1704 = vmatmul.f32.gmra.mxu0 %v1668
    %v1705 = vpop.f32.mrf.mxu0
    %v1706 = vadd.f32 0.0, %v1705
    %1707 = vmatmul.f32.gmra.mxu0 %v1671
    %v1708 = vpop.f32.mrf.mxu0
    %v1709 = vadd.f32 0.0, %v1708
    %1710 = vmatmul.f32.gmra.mxu0 %v1674
    %v1711 = vpop.f32.mrf.mxu0
    %v1712 = vadd.f32 0.0, %v1711
    %1713 = vdwg.mxu0
    %vm1714 = vcmask 523264
    %1715 = vst.msk [vmem:[#allocation2] sm:$0xff] %vm1714, %v1694
    %1716 = vst.msk [vmem:[#allocation2 + $0x8] sm:$0xff] %vm1714, %v1697
    %1717 = vst.msk [vmem:[#allocation2 + $0x10] sm:$0xff] %vm1714, %v1700
    %1718 = vst.msk [vmem:[#allocation2 + $0x18] sm:$0xff] %vm1714, %v1703
    %1719 = vst.msk [vmem:[#allocation2 + $0x20] sm:$0xff] %vm1714, %v1706
    %1720 = vst.msk [vmem:[#allocation2 + $0x28] sm:$0xff] %vm1714, %v1709
    %vm1721 = vcmask 516096
    %1722 = vst.msk [vmem:[#allocation2 + $0x30] sm:$0x1] %vm1721, %v1712
    %v1723 = vld [vmem:[#allocation2] ss:$32 sm:$0x1]
    %v1724 = vld [vmem:[#allocation2] ss:$32 sm:$0x2]
    %v1725 = vor.u32 %v1723, %v1724
    %v1726 = vld [vmem:[%s7] sm:$0xff]
    %v1727 = vld [vmem:[%s7 + $0x8] sm:$0xff]
    %v1728 = vld [vmem:[%s7 + $0x10] sm:$0xff]
    %v1729 = vld [vmem:[%s7 + $0x18] sm:$0xff]
    %v1730 = vld [vmem:[%s7 + $0x20] sm:$0xff]
    %v1731 = vld [vmem:[%s7 + $0x28] sm:$0xff]
    %v1732 = vld [vmem:[%s7 + $0x30] sm:$0xff]
    %v1733 = vld [vmem:[%s7 + $0x38] sm:$0xff]
    %s1734 = scalar_lea.vmem [#allocation2], 4
    %v1735 = vld [vmem:[%s1734] ss:$32 sm:$0x1]
    %v1736 = vld [vmem:[%s1734] ss:$32 sm:$0x2]
    %v1737 = vor.u32 %v1735, %v1736
    %v1738 = vld [vmem:[%s7 + $0x40] sm:$0xff]
    %v1739 = vld [vmem:[%s7 + $0x48] sm:$0xff]
    %v1740 = vld [vmem:[%s7 + $0x50] sm:$0xff]
    %v1741 = vld [vmem:[%s7 + $0x58] sm:$0xff]
    %v1742 = vld [vmem:[%s7 + $0x60] sm:$0xff]
    %v1743 = vld [vmem:[%s7 + $0x68] sm:$0xff]
    %v1744 = vld [vmem:[%s7 + $0x70] sm:$0xff]
    %v1745 = vld [vmem:[%s7 + $0x78] sm:$0xff]
    %v1747 = vsel %vm1714, %v1737, 0
    %1749 = vmatpush.msra.mxu0 0.0
    %1750 = vmatpush.msra.mxu0 0.0
    %1751 = vmatpush.msra.mxu0 0.0
    %1752 = vmatpush.msra.mxu0 0.0
    %1753 = vmatpush.msra.mxu0 0.0
    %1754 = vmatpush.msra.mxu0 0.0
    %1755 = vmatpush.msra.mxu0 0.0
    %1756 = vmatpush.msra.mxu0 0.0
    %1757 = vmatpush.msra.mxu0 %v1745
    %1758 = vmatpush.msra.mxu0 %v1744
    %1759 = vmatpush.msra.mxu0 %v1743
    %1760 = vmatpush.msra.mxu0 %v1742
    %1761 = vmatpush.msra.mxu0 %v1741
    %1762 = vmatpush.msra.mxu0 %v1740
    %1763 = vmatpush.msra.mxu0 %v1739
    %1764 = vmatpush.msra.mxu0 %v1738
    %1765 = vmatmul.f32.gmra.mxu0 %v1747
    %v1766 = vpop.f32.mrf.mxu0
    %v1767 = vadd.f32 0.0, %v1766
    %1768 = vdwg.mxu0
    %v1770 = vsel %vm1714, %v1725, 0
    %1772 = vmatpush.msra.mxu0 0.0
    %1773 = vmatpush.msra.mxu0 0.0
    %1774 = vmatpush.msra.mxu0 0.0
    %1775 = vmatpush.msra.mxu0 0.0
    %1776 = vmatpush.msra.mxu0 0.0
    %1777 = vmatpush.msra.mxu0 0.0
    %1778 = vmatpush.msra.mxu0 0.0
    %1779 = vmatpush.msra.mxu0 0.0
    %1780 = vmatpush.msra.mxu0 %v1733
    %1781 = vmatpush.msra.mxu0 %v1732
    %1782 = vmatpush.msra.mxu0 %v1731
    %1783 = vmatpush.msra.mxu0 %v1730
    %1784 = vmatpush.msra.mxu0 %v1729
    %1785 = vmatpush.msra.mxu0 %v1728
    %1786 = vmatpush.msra.mxu0 %v1727
    %1787 = vmatpush.msra.mxu0 %v1726
    %1788 = vmatmul.f32.gmra.mxu0 %v1770
    %v1789 = vpop.f32.mrf.mxu0
    %v1790 = vadd.f32 %v1767, %v1789
    %1791 = vdwg.mxu0
    %s1792 = scalar_lea.vmem [#allocation2], 8
    %v1793 = vld [vmem:[%s1792] ss:$32 sm:$0x1]
    %v1794 = vld [vmem:[%s1792] ss:$32 sm:$0x2]
    %v1795 = vor.u32 %v1793, %v1794
    %v1796 = vld [vmem:[%s7 + $0x80] sm:$0xff]
    %v1797 = vld [vmem:[%s7 + $0x88] sm:$0xff]
    %v1798 = vld [vmem:[%s7 + $0x90] sm:$0xff]
    %v1799 = vld [vmem:[%s7 + $0x98] sm:$0xff]
    %v1800 = vld [vmem:[%s7 + $0xa0] sm:$0xff]
    %v1801 = vld [vmem:[%s7 + $0xa8] sm:$0xff]
    %v1802 = vld [vmem:[%s7 + $0xb0] sm:$0xff]
    %v1803 = vld [vmem:[%s7 + $0xb8] sm:$0xff]
    %v1805 = vsel %vm1714, %v1795, 0
    %1807 = vmatpush.msra.mxu0 0.0
    %1808 = vmatpush.msra.mxu0 0.0
    %1809 = vmatpush.msra.mxu0 0.0
    %1810 = vmatpush.msra.mxu0 0.0
    %1811 = vmatpush.msra.mxu0 0.0
    %1812 = vmatpush.msra.mxu0 0.0
    %1813 = vmatpush.msra.mxu0 0.0
    %1814 = vmatpush.msra.mxu0 0.0
    %1815 = vmatpush.msra.mxu0 %v1803
    %1816 = vmatpush.msra.mxu0 %v1802
    %1817 = vmatpush.msra.mxu0 %v1801
    %1818 = vmatpush.msra.mxu0 %v1800
    %1819 = vmatpush.msra.mxu0 %v1799
    %1820 = vmatpush.msra.mxu0 %v1798
    %1821 = vmatpush.msra.mxu0 %v1797
    %1822 = vmatpush.msra.mxu0 %v1796
    %1823 = vmatmul.f32.gmra.mxu0 %v1805
    %v1824 = vpop.f32.mrf.mxu0
    %v1825 = vadd.f32 0.0, %v1824
    %1826 = vdwg.mxu0
    %v1827 = vadd.f32 %v1790, %v1825
    %s1828 = scalar_lea.vmem [#allocation2], 12
    %v1829 = vld [vmem:[%s1828] ss:$32 sm:$0x1]
    %v1830 = vld [vmem:[%s1828] ss:$32 sm:$0x2]
    %v1831 = vor.u32 %v1829, %v1830
    %v1832 = vld [vmem:[%s7 + $0xc0] sm:$0xff]
    %v1833 = vld [vmem:[%s7 + $0xc8] sm:$0xff]
    %v1834 = vld [vmem:[%s7 + $0xd0] sm:$0xff]
    %v1835 = vld [vmem:[%s7 + $0xd8] sm:$0xff]
    %v1836 = vld [vmem:[%s7 + $0xe0] sm:$0xff]
    %v1837 = vld [vmem:[%s7 + $0xe8] sm:$0xff]
    %v1838 = vld [vmem:[%s7 + $0xf0] sm:$0xff]
    %v1839 = vld [vmem:[%s7 + $0xf8] sm:$0xff]
    %v1841 = vsel %vm1714, %v1831, 0
    %1843 = vmatpush.msra.mxu0 0.0
    %1844 = vmatpush.msra.mxu0 0.0
    %1845 = vmatpush.msra.mxu0 0.0
    %1846 = vmatpush.msra.mxu0 0.0
    %1847 = vmatpush.msra.mxu0 0.0
    %1848 = vmatpush.msra.mxu0 0.0
    %1849 = vmatpush.msra.mxu0 0.0
    %1850 = vmatpush.msra.mxu0 0.0
    %1851 = vmatpush.msra.mxu0 %v1839
    %1852 = vmatpush.msra.mxu0 %v1838
    %1853 = vmatpush.msra.mxu0 %v1837
    %1854 = vmatpush.msra.mxu0 %v1836
    %1855 = vmatpush.msra.mxu0 %v1835
    %1856 = vmatpush.msra.mxu0 %v1834
    %1857 = vmatpush.msra.mxu0 %v1833
    %1858 = vmatpush.msra.mxu0 %v1832
    %1859 = vmatmul.f32.gmra.mxu0 %v1841
    %v1860 = vpop.f32.mrf.mxu0
    %v1861 = vadd.f32 0.0, %v1860
    %1862 = vdwg.mxu0
    %v1863 = vadd.f32 %v1827, %v1861
    %v1864 = vld [vmem:[%s8] sm:$0x1]
    %v1866 = vperm.slane %v1864, 0
    %v1868 = vadd.f32 %v1863, %v1866
    %v1869 = vtanh.pop %v1868
    %v1870 = vld [vmem:[#allocation8] sm:$0xff]
    %v1871 = vld [vmem:[#allocation8 + $0x8] sm:$0xff]
    %v1872 = vld [vmem:[#allocation8 + $0x10] sm:$0xff]
    %v1873 = vld [vmem:[#allocation8 + $0x18] sm:$0xff]
    %v1874 = vld [vmem:[#allocation8 + $0x20] sm:$0xff]
    %v1875 = vld [vmem:[#allocation8 + $0x28] sm:$0xff]
    %v1876 = vld [vmem:[#allocation8 + $0x30] sm:$0xff]
    %v1877 = vld [vmem:[#allocation8 + $0x38] sm:$0xff]
    %v1878 = vld [vmem:[#allocation8 + $0x40] sm:$0xff]
    %v1879 = vld [vmem:[#allocation8 + $0x48] sm:$0xff]
    %v1880 = vld [vmem:[#allocation8 + $0x50] sm:$0xff]
    %v1881 = vld [vmem:[#allocation8 + $0x58] sm:$0xff]
    %v1882 = vld [vmem:[#allocation8 + $0x60] sm:$0xff]
    %v1883 = vld [vmem:[#allocation8 + $0x68] sm:$0xff]
    %v1884 = vld [vmem:[#allocation8 + $0x70] sm:$0xff]
    %v1885 = vld [vmem:[#allocation8 + $0x78] sm:$0xff]
    %v1886 = vld [vmem:[%s10] sm:$0x1]
    %v1888 = vperm.slane %v1886, 0
    %1890 = vmatpush.msra.mxu0 %v1885
    %1891 = vmatpush.msra.mxu0 %v1884
    %1892 = vmatpush.msra.mxu0 %v1883
    %1893 = vmatpush.msra.mxu0 %v1882
    %1894 = vmatpush.msra.mxu0 %v1881
    %1895 = vmatpush.msra.mxu0 %v1880
    %1896 = vmatpush.msra.mxu0 %v1879
    %1897 = vmatpush.msra.mxu0 %v1878
    %1898 = vmatpush.msra.mxu0 %v1877
    %1899 = vmatpush.msra.mxu0 %v1876
    %1900 = vmatpush.msra.mxu0 %v1875
    %1901 = vmatpush.msra.mxu0 %v1874
    %1902 = vmatpush.msra.mxu0 %v1873
    %1903 = vmatpush.msra.mxu0 %v1872
    %1904 = vmatpush.msra.mxu0 %v1871
    %1905 = vmatpush.msra.mxu0 %v1870
    %1906 = vmatmul.f32.gmra.mxu0 %v1869
    %v1907 = vpop.f32.mrf.mxu0
    %v1908 = vadd.f32 %v1888, %v1907
    %1909 = vdwg.mxu0
    %v1910 = vtanh.pop %v1908
    %v1911 = vld [vmem:[#allocation9] sm:$0xff]
    %v1912 = vld [vmem:[#allocation9 + $0x8] sm:$0xff]
    %v1913 = vld [vmem:[#allocation9 + $0x10] sm:$0xff]
    %v1914 = vld [vmem:[#allocation9 + $0x18] sm:$0xff]
    %v1915 = vld [vmem:[#allocation9 + $0x20] sm:$0xff]
    %v1916 = vld [vmem:[#allocation9 + $0x28] sm:$0xff]
    %v1917 = vld [vmem:[#allocation9 + $0x30] sm:$0xff]
    %v1918 = vld [vmem:[#allocation9 + $0x38] sm:$0xff]
    %v1919 = vld [vmem:[#allocation9 + $0x40] sm:$0xff]
    %v1920 = vld [vmem:[#allocation9 + $0x48] sm:$0xff]
    %v1921 = vld [vmem:[#allocation9 + $0x50] sm:$0xff]
    %v1922 = vld [vmem:[#allocation9 + $0x58] sm:$0xff]
    %v1923 = vld [vmem:[#allocation9 + $0x60] sm:$0xff]
    %v1924 = vld [vmem:[#allocation9 + $0x68] sm:$0xff]
    %v1925 = vld [vmem:[#allocation9 + $0x70] sm:$0xff]
    %v1926 = vld [vmem:[#allocation9 + $0x78] sm:$0xff]
    %v1927 = vld [vmem:[%s12] sm:$0x1]
    %v1929 = vperm.slane %v1927, 0
    %1931 = vmatpush.msra.mxu0 %v1926
    %1932 = vmatpush.msra.mxu0 %v1925
    %1933 = vmatpush.msra.mxu0 %v1924
    %1934 = vmatpush.msra.mxu0 %v1923
    %1935 = vmatpush.msra.mxu0 %v1922
    %1936 = vmatpush.msra.mxu0 %v1921
    %1937 = vmatpush.msra.mxu0 %v1920
    %1938 = vmatpush.msra.mxu0 %v1919
    %1939 = vmatpush.msra.mxu0 %v1918
    %1940 = vmatpush.msra.mxu0 %v1917
    %1941 = vmatpush.msra.mxu0 %v1916
    %1942 = vmatpush.msra.mxu0 %v1915
    %1943 = vmatpush.msra.mxu0 %v1914
    %1944 = vmatpush.msra.mxu0 %v1913
    %1945 = vmatpush.msra.mxu0 %v1912
    %1946 = vmatpush.msra.mxu0 %v1911
    %1947 = vmatmul.f32.gmra.mxu0 %v1910
    %v1948 = vpop.f32.mrf.mxu0
    %v1949 = vadd.f32 %v1929, %v1948
    %1950 = vdwg.mxu0
    %v1951 = vsel %vm990, %v1949, -inf
    %1952 = vmax.xlane.f32.xlu0 %v1951
    %v1953 = vpop.xlane.xlu0 %1952
    %v1954 = vsub.f32 %v1949, %v1953
    %v1955 = vmul.f32 %v1954, 1.442695
    %v1956 = vpow.pop %v1955
    %v1957 = vsel %vm990, %v1956, 0.0
    %1958 = vadd.xlane.f32.xlu0 %v1957
    %v1959 = vpop.xlane.xlu0 %1958
    %v1960 = vrcp.pop %v1959
    %v1961 = vmul.f32 %v1959, %v1960
    %v1962 = vsub.f32 1.0, %v1961
    %v1963 = vmul.f32 %v1960, %v1962
    %v1964 = vadd.f32 %v1960, %v1963
    %vm1965 = vweird.f32 %v1959
    %vm1966 = vweird.f32 %v1960
    %vm1967 = vmor %vm1965, %vm1966
    %v1968 = vsel %vm1967, %v1960, %v1964
    %v1969 = vand.u32 2147483647, %v1959
    %vm1970 = vcmp.eq.f32.partialorder %v1969, 8.507059e+37
    %v1971 = vand.u32 %v1959, 2147483648
    %v1972 = vor.u32 1.1754944e-38, %v1971
    %v1973 = vsel %vm1970, %v1972, %v1968
    %v1974 = vmul.f32 %v1956, %v1973
    %1975 = vst [vmem:[#allocation11] sm:$0x3] %v1974
    // Predicated region
    $region70: #{lenet1_forward.1} parent=1 // pred_check
      _
    $region71: #{lenet1_forward.1} parent=1 // pred_check_branch
      %1977 = sbr.rel (0) target = $region73
    $region72: #{lenet1_forward.1} parent=1 // pred_region
      %1979 = vsyncadd [#allocation5], 0
      %s1981 = sshll.u32 [#allocation11], 4
      %s1982 = int_to_ptr.vmem [resolvable:$true] %s1981
      %s1983 = sshll.u32 %s13, 4
      %s1984 = int_to_ptr.hbm [resolvable:$true] %s1983
      %1986 = dma.vmem_to_hbm [thread:$0]  %s1982, 32, %s1984, [#allocation5]
    $region73: #{lenet1_forward.1} parent=1 // pred_fallthru
      _
    // Predicated region
    $region74: #{lenet1_forward.1} parent=1 // pred_check
      _
    $region75: #{lenet1_forward.1} parent=1 // pred_check_branch
      %1988 = sbr.rel (0) target = $region77
    $region76: #{lenet1_forward.1} parent=1 // pred_region
      %1990 = dma.done [#allocation5], 32
    $region77: #{lenet1_forward.1} parent=1 // pred_fallthru
      _
    %1991 = vsyncpa [#allocation4], 1
    %1992 = vsyncpa [#allocation7], 1
    %1993 = vsyncpa [#allocation10], 1
    %1994 = vsyncpa [#allocation5], 1

</llo_original>
